<compile_context>
chip_gen: v7x
topology: tpu7x:2x2x1
jax: 0.10.0
libtpu: 0.0.40
codegen_flags: <defaults>
</compile_context>

<pallas_src>
import functools

import jax
import jax.numpy as jnp
from jax.experimental import pallas as pl
from jax.experimental.pallas import tpu as pltpu

LANE = 128
SUBLANE = 8


def _round_up(x, m):
    return ((x + m - 1) // m) * m


# ---------------------------------------------------------------------------
# Kernel: fused (embedding fold + Linear + ReLU) stack for one row tile.
# refs = (x, idx, emb_proj, w0x, w1, b1, ..., w_{L-1}, b_{L-1}, out)
# ---------------------------------------------------------------------------
def _encoder_kernel(num_layers, mxu_dtype, *refs):
    x_ref, idx_ref, emb_ref, w0_ref = refs[:4]
    out_ref = refs[-1]
    wb = refs[4:-1]

    x = x_ref[...].astype(mxu_dtype)          # (TM, in_ch)   cast in-kernel
    idx = idx_ref[...]                        # (TM, 1) int32
    tm = x.shape[0]
    nb_pad = emb_ref.shape[0]

    # Embedding gather as a tiny one-hot matmul (MXU, no cross-lane shuffles).
    iota = jax.lax.broadcasted_iota(jnp.int32, (tm, nb_pad), 1)
    onehot = (iota == idx).astype(mxu_dtype)

    # Layer 0:  relu(x @ W0x + onehot @ (E @ W0e + b0))   (bias pre-folded)
    h = jnp.dot(x, w0_ref[...], preferred_element_type=jnp.float32)
    h = h + jnp.dot(onehot, emb_ref[...], preferred_element_type=jnp.float32)
    h = jnp.maximum(h, 0.0)

    # Remaining layers. ReLU after every layer (including the final latent
    # layer) -- this matches the PyTorch module, which applies F.relu to the
    # output of every fc_layers entry.
    for l in range(num_layers - 1):
        w = wb[2 * l][...]
        b = wb[2 * l + 1][...]
        h = jnp.dot(h.astype(mxu_dtype), w, preferred_element_type=jnp.float32)
        h = jnp.maximum(h + b, 0.0)           # f32 epilogue (safe on v5e)

    out_ref[...] = h.astype(out_ref.dtype)


# ---------------------------------------------------------------------------
# Weight-only prep: run ONCE and cache (it only depends on params).
# Folds the embedding table and layer-0 bias through W0, pads hidden widths to
# 128 lanes, casts MXU operands to bf16. The final (latent) width stays
# unpadded so the kernel can emit the output lane-exactly.
# ---------------------------------------------------------------------------
def prepare_params(params, in_channels, mxu_dtype=jnp.bfloat16):
    weights, biases, emb = params["weights"], params["biases"], params["embedding"]
    num_layers = len(weights)

    d_out = [w.shape[1] for w in weights]
    d_pad = [_round_up(d, LANE) for d in d_out[:-1]] + [d_out[-1]]
    nb_pad = _round_up(emb.shape[0], SUBLANE)

    def pad2(a, rows, cols, dtype):
        out = jnp.zeros((rows, cols), dtype)
        return out.at[: a.shape[0], : a.shape[1]].set(a.astype(dtype))

    w0 = weights[0]
    w0x = pad2(w0[:in_channels, :], in_channels, d_pad[0], mxu_dtype)
    # Fold embedding AND layer-0 bias: every row hits exactly one one-hot row.
    emb_proj = emb @ w0[in_channels:, :] + biases[0][None, :]
    emb_proj = pad2(emb_proj, nb_pad, d_pad[0], mxu_dtype)

    pw, pb = [], []
    for l in range(1, num_layers):
        pw.append(pad2(weights[l], d_pad[l - 1], d_pad[l], mxu_dtype))
        pb.append(pad2(biases[l][None, :], 1, d_pad[l], jnp.float32))

    return {"w0x": w0x, "emb_proj": emb_proj, "weights": pw, "biases": pb}


# ---------------------------------------------------------------------------
# Forward wrapper: pick a large row tile, run the fused kernel.
# `out_dtype=jnp.bfloat16` halves output writeback if downstream accepts it;
# default stays f32 to match the PyTorch module.
# ---------------------------------------------------------------------------
def encoder_forward(prepared, x, batch_index, *, tm=1024, out_dtype=jnp.float32):
    n, in_ch = x.shape
    w0x = prepared["w0x"]
    emb_proj = prepared["emb_proj"]
    ws, bs = prepared["weights"], prepared["biases"]
    num_layers = 1 + len(ws)
    latent_dim = bs[-1].shape[1] if bs else w0x.shape[1]
    mxu_dtype = w0x.dtype

    # Row tile: as large as possible (mem/overhead-bound), but keep >= 2 grid
    # steps for small N so both TensorCores get work on v7x megacore.
    n8 = _round_up(max(n, 1), SUBLANE)
    if n8 <= SUBLANE:
        tm = SUBLANE
    elif n8 <= tm:
        tm = _round_up(pl.cdiv(n8, 2), SUBLANE)
    grid = (pl.cdiv(n, tm),)

    idx = batch_index.reshape(-1, 1).astype(jnp.int32)

    args = [x, idx, emb_proj, w0x]
    in_specs = [
        pl.BlockSpec((tm, in_ch), lambda i: (i, 0)),      # x: row-tiled, unpadded
        pl.BlockSpec((tm, 1), lambda i: (i, 0)),          # idx: row-tiled
        pl.BlockSpec(emb_proj.shape, lambda i: (0, 0)),   # VMEM-resident table
        pl.BlockSpec(w0x.shape, lambda i: (0, 0)),        # VMEM-resident weights
    ]
    for w, b in zip(ws, bs):
        args += [w, b]
        in_specs += [pl.BlockSpec(w.shape, lambda i: (0, 0)),
                     pl.BlockSpec(b.shape, lambda i: (0, 0))]

    # Advisory cost estimate: tiny-MXU, HBM/overhead-bound kernel.
    k_dims = [in_ch, emb_proj.shape[0]] + [w.shape[0] for w in ws]
    n_dims = [w0x.shape[1], w0x.shape[1]] + [w.shape[1] for w in ws]
    flops = 2 * n * sum(k * m for k, m in zip(k_dims, n_dims))
    bytes_accessed = (
        x.size * x.dtype.itemsize
        + idx.size * 4
        + n * latent_dim * jnp.dtype(out_dtype).itemsize
        + sum(a.size * a.dtype.itemsize for a in [emb_proj, w0x] + ws + bs)
    )

    kernel = functools.partial(_encoder_kernel, num_layers, mxu_dtype)

    return pl.pallas_call(
        kernel,
        out_shape=jax.ShapeDtypeStruct((n, latent_dim), out_dtype),
        grid=grid,
        in_specs=in_specs,
        out_specs=pl.BlockSpec((tm, latent_dim), lambda i: (i, 0)),
        compiler_params=pltpu.CompilerParams(
            dimension_semantics=("parallel",)),           # row tiles across TCs
        cost_estimate=pl.CostEstimate(
            flops=flops, transcendentals=0, bytes_accessed=bytes_accessed),
    )(*args)


# ---------------------------------------------------------------------------
# Parameter construction (PyTorch-equivalent shapes) + pure-JAX f32 reference.
# ---------------------------------------------------------------------------
def init_params(key, in_channels, batch_dim, latent_dim, hidden_dims, num_batches):
    dims = [in_channels + batch_dim] + list(hidden_dims) + [latent_dim]
    weights, biases = [], []
    for l in range(len(dims) - 1):
        key, kw, kb = jax.random.split(key, 3)
        bound = 1.0 / jnp.sqrt(dims[l])
        # PyTorch Linear stores (out, in); we store the transposed (in, out).
        w = jax.random.uniform(kw, (dims[l], dims[l + 1]), jnp.float32,
                               minval=-bound, maxval=bound)
        b = jax.random.uniform(kb, (dims[l + 1],), jnp.float32,
                               minval=-bound, maxval=bound)
        weights.append(w)
        biases.append(b)
    key, ke = jax.random.split(key)
    embedding = jax.random.normal(ke, (num_batches, batch_dim), jnp.float32)
    return {"weights": weights, "biases": biases, "embedding": embedding}


def encoder_forward_ref(params, x, batch_index):
    """Pure-JAX f32 reference mirroring the PyTorch forward exactly."""
    batch_info = jnp.take(params["embedding"], batch_index.reshape(-1), axis=0)
    h = jnp.concatenate([x, batch_info], axis=-1)
    for w, b in zip(params["weights"], params["biases"]):
        h = jnp.maximum(h @ w + b, 0.0)
    return h


if __name__ == "__main__":
    # Small shapes consistent with the module; N chosen so the row tiling
    # produces a 2-step grid with a ragged (clipped) last tile.
    N = 600
    in_channels = 16
    batch_dim = 8
    latent_dim = 8
    hidden_dims = [64, 32]
    num_batches = 6

    key = jax.random.PRNGKey(0)
    kparam, kx, ki = jax.random.split(key, 3)

    params = init_params(kparam, in_channels, batch_dim, latent_dim,
                         hidden_dims, num_batches)
    x = jax.random.normal(kx, (N, in_channels), jnp.float32)
    batch_index = jax.random.randint(ki, (N, 1), 0, num_batches, dtype=jnp.int32)

    # Weight-only prep: run once, reuse across forward calls.
    prepared = prepare_params(params, in_channels)

    fwd = jax.jit(encoder_forward)
    out = jax.block_until_ready(fwd(prepared, x, batch_index))

    ref = encoder_forward_ref(params, x, batch_index)
    assert out.shape == (N, latent_dim), out.shape
    max_err = float(jnp.max(jnp.abs(out - ref)))
    # bf16 MXU operands with f32 accumulation vs f32 reference.
    assert max_err < 5e-2, f"max err {max_err}"

    print("KERNEL_OK")
</pallas_src>

<mosaic_0001>
module attributes {stable_mosaic.version = 11 : i64} {
  func.func @_encoder_kernel(%arg0: i32, %arg1: memref<304x16xf32, #tpu.memory_space<vmem>>, %arg2: memref<304x1xi32, #tpu.memory_space<vmem>>, %arg3: memref<8x128xbf16, #tpu.memory_space<vmem>>, %arg4: memref<16x128xbf16, #tpu.memory_space<vmem>>, %arg5: memref<128x128xbf16, #tpu.memory_space<vmem>>, %arg6: memref<1x128xf32, #tpu.memory_space<vmem>>, %arg7: memref<128x8xbf16, #tpu.memory_space<vmem>>, %arg8: memref<1x8xf32, #tpu.memory_space<vmem>>, %arg9: memref<304x8xf32, #tpu.memory_space<vmem>>) attributes {dimension_semantics = [#tpu.dimension_semantics<parallel>], iteration_bounds = array<i64: 2>, scalar_prefetch = 0 : i64, scratch_operands = 0 : i64, tpu.core_type = #tpu.core_type<tc>, window_params = [{transform_indices = @transform_0, window_bounds = array<i64: 304, 16>}, {transform_indices = @transform_1, window_bounds = array<i64: 304, 1>}, {pipeline_mode = #tpu.pipeline_mode<synchronous>, transform_indices = @transform_2, window_bounds = array<i64: 8, 128>}, {pipeline_mode = #tpu.pipeline_mode<synchronous>, transform_indices = @transform_3, window_bounds = array<i64: 16, 128>}, {pipeline_mode = #tpu.pipeline_mode<synchronous>, transform_indices = @transform_4, window_bounds = array<i64: 128, 128>}, {pipeline_mode = #tpu.pipeline_mode<synchronous>, transform_indices = @transform_5, window_bounds = array<i64: 1, 128>}, {pipeline_mode = #tpu.pipeline_mode<synchronous>, transform_indices = @transform_6, window_bounds = array<i64: 128, 8>}, {pipeline_mode = #tpu.pipeline_mode<synchronous>, transform_indices = @transform_7, window_bounds = array<i64: 1, 8>}, {transform_indices = @transform_8, window_bounds = array<i64: 304, 8>}]} {
    %c0 = arith.constant 0 : index
    %c0_0 = arith.constant 0 : index
    %0 = vector.load %arg1[%c0, %c0_0] : memref<304x16xf32, #tpu.memory_space<vmem>>, vector<304x16xf32>
    %1 = arith.truncf %0 : vector<304x16xf32> to vector<304x16xbf16>
    %c0_1 = arith.constant 0 : index
    %c0_2 = arith.constant 0 : index
    %2 = vector.load %arg2[%c0_1, %c0_2] : memref<304x1xi32, #tpu.memory_space<vmem>>, vector<304x1xi32>
    %3 = tpu.iota {dimensions = array<i32: 1>} : vector<304x8xi32>
    %4 = vector.broadcast %2 : vector<304x1xi32> to vector<304x8xi32>
    %5 = arith.cmpi eq, %3, %4 : vector<304x8xi32>
    %6 = arith.extui %5 : vector<304x8xi1> to vector<304x8xi32>
    %7 = arith.sitofp %6 : vector<304x8xi32> to vector<304x8xf32>
    %8 = arith.truncf %7 : vector<304x8xf32> to vector<304x8xbf16>
    %c0_3 = arith.constant 0 : index
    %c0_4 = arith.constant 0 : index
    %9 = vector.load %arg4[%c0_3, %c0_4] : memref<16x128xbf16, #tpu.memory_space<vmem>>, vector<16x128xbf16>
    %cst = arith.constant dense<0.000000e+00> : vector<304x128xf32>
    %10 = tpu.matmul %1, %9, %cst {dimension_numbers = #tpu.dot_dimension_numbers<[1], [0], [0], [1], [0, 0, 1, 1], [], []>} : vector<304x16xbf16>, vector<16x128xbf16>, vector<304x128xf32> -> vector<304x128xf32>
    %c0_5 = arith.constant 0 : index
    %c0_6 = arith.constant 0 : index
    %11 = vector.load %arg3[%c0_5, %c0_6] : memref<8x128xbf16, #tpu.memory_space<vmem>>, vector<8x128xbf16>
    %cst_7 = arith.constant dense<0.000000e+00> : vector<304x128xf32>
    %12 = tpu.matmul %8, %11, %cst_7 {dimension_numbers = #tpu.dot_dimension_numbers<[1], [0], [0], [1], [0, 0, 1, 1], [], []>} : vector<304x8xbf16>, vector<8x128xbf16>, vector<304x128xf32> -> vector<304x128xf32>
    %13 = arith.addf %10, %12 : vector<304x128xf32>
    %cst_8 = arith.constant 0.000000e+00 : f32
    %14 = vector.broadcast %cst_8 : f32 to vector<304x128xf32>
    %15 = arith.maximumf %13, %14 : vector<304x128xf32>
    %c0_9 = arith.constant 0 : index
    %c0_10 = arith.constant 0 : index
    %16 = vector.load %arg5[%c0_9, %c0_10] : memref<128x128xbf16, #tpu.memory_space<vmem>>, vector<128x128xbf16>
    %c0_11 = arith.constant 0 : index
    %c0_12 = arith.constant 0 : index
    %17 = vector.load %arg6[%c0_11, %c0_12] : memref<1x128xf32, #tpu.memory_space<vmem>>, vector<1x128xf32>
    %18 = arith.truncf %15 : vector<304x128xf32> to vector<304x128xbf16>
    %cst_13 = arith.constant dense<0.000000e+00> : vector<304x128xf32>
    %19 = tpu.matmul %18, %16, %cst_13 {dimension_numbers = #tpu.dot_dimension_numbers<[1], [0], [0], [1], [0, 0, 1, 1], [], []>} : vector<304x128xbf16>, vector<128x128xbf16>, vector<304x128xf32> -> vector<304x128xf32>
    %20 = vector.broadcast %17 : vector<1x128xf32> to vector<304x128xf32>
    %21 = arith.addf %19, %20 : vector<304x128xf32>
    %cst_14 = arith.constant 0.000000e+00 : f32
    %22 = vector.broadcast %cst_14 : f32 to vector<304x128xf32>
    %23 = arith.maximumf %21, %22 : vector<304x128xf32>
    %c0_15 = arith.constant 0 : index
    %c0_16 = arith.constant 0 : index
    %24 = vector.load %arg7[%c0_15, %c0_16] : memref<128x8xbf16, #tpu.memory_space<vmem>>, vector<128x8xbf16>
    %c0_17 = arith.constant 0 : index
    %c0_18 = arith.constant 0 : index
    %25 = vector.load %arg8[%c0_17, %c0_18] : memref<1x8xf32, #tpu.memory_space<vmem>>, vector<1x8xf32>
    %26 = arith.truncf %23 : vector<304x128xf32> to vector<304x128xbf16>
    %cst_19 = arith.constant dense<0.000000e+00> : vector<304x8xf32>
    %27 = tpu.matmul %26, %24, %cst_19 {dimension_numbers = #tpu.dot_dimension_numbers<[1], [0], [0], [1], [0, 0, 1, 1], [], []>} : vector<304x128xbf16>, vector<128x8xbf16>, vector<304x8xf32> -> vector<304x8xf32>
    %28 = vector.broadcast %25 : vector<1x8xf32> to vector<304x8xf32>
    %29 = arith.addf %27, %28 : vector<304x8xf32>
    %cst_20 = arith.constant 0.000000e+00 : f32
    %30 = vector.broadcast %cst_20 : f32 to vector<304x8xf32>
    %31 = arith.maximumf %29, %30 : vector<304x8xf32>
    %c0_21 = arith.constant 0 : index
    %c0_22 = arith.constant 0 : index
    %32 = vector.load %arg9[%c0_21, %c0_22] : memref<304x8xf32, #tpu.memory_space<vmem>>, vector<304x8xf32>
    tpu.vector_store %arg9[%c0_21, %c0_22], %31 {strides = array<i32>} : memref<304x8xf32, #tpu.memory_space<vmem>>, vector<304x8xf32>,
    return
  }
  func.func @transform_0(%arg0: i32) -> (i32, i32) {
    %c0_i32 = arith.constant 0 : i32
    %c0_i32_0 = arith.constant 0 : i32
    return %arg0, %c0_i32 : i32, i32
  }
  func.func @transform_1(%arg0: i32) -> (i32, i32) {
    %c0_i32 = arith.constant 0 : i32
    %c0_i32_0 = arith.constant 0 : i32
    return %arg0, %c0_i32 : i32, i32
  }
  func.func @transform_2(%arg0: i32) -> (i32, i32) {
    %c0_i32 = arith.constant 0 : i32
    %c0_i32_0 = arith.constant 0 : i32
    %c0_i32_1 = arith.constant 0 : i32
    return %c0_i32, %c0_i32_0 : i32, i32
  }
  func.func @transform_3(%arg0: i32) -> (i32, i32) {
    %c0_i32 = arith.constant 0 : i32
    %c0_i32_0 = arith.constant 0 : i32
    %c0_i32_1 = arith.constant 0 : i32
    return %c0_i32, %c0_i32_0 : i32, i32
  }
  func.func @transform_4(%arg0: i32) -> (i32, i32) {
    %c0_i32 = arith.constant 0 : i32
    %c0_i32_0 = arith.constant 0 : i32
    %c0_i32_1 = arith.constant 0 : i32
    return %c0_i32, %c0_i32_0 : i32, i32
  }
  func.func @transform_5(%arg0: i32) -> (i32, i32) {
    %c0_i32 = arith.constant 0 : i32
    %c0_i32_0 = arith.constant 0 : i32
    %c0_i32_1 = arith.constant 0 : i32
    return %c0_i32, %c0_i32_0 : i32, i32
  }
  func.func @transform_6(%arg0: i32) -> (i32, i32) {
    %c0_i32 = arith.constant 0 : i32
    %c0_i32_0 = arith.constant 0 : i32
    %c0_i32_1 = arith.constant 0 : i32
    return %c0_i32, %c0_i32_0 : i32, i32
  }
  func.func @transform_7(%arg0: i32) -> (i32, i32) {
    %c0_i32 = arith.constant 0 : i32
    %c0_i32_0 = arith.constant 0 : i32
    %c0_i32_1 = arith.constant 0 : i32
    return %c0_i32, %c0_i32_0 : i32, i32
  }
  func.func @transform_8(%arg0: i32) -> (i32, i32) {
    %c0_i32 = arith.constant 0 : i32
    %c0_i32_0 = arith.constant 0 : i32
    return %arg0, %c0_i32 : i32, i32
  }
}

</mosaic_0001>

<llo_original>
// kernel: encoder_forward.1
$region0: #{encoder_forward.1}
  #allocation0 [shape = 'u32[]', space=smem, size = 0x4, offset = 0x4, fixed_abs, tag = 'smem constant byte address 0x4 - core index']
  #allocation1 [shape = 'u32[144,128]{1,0:T(1,128)}', space=vmem, size = 0x12000, scoped, tag = 'internal scratch']
  %s0 = inlined_call_operand.vmem [shape: f32[600,16], index: 0, kind: input, shape index: {}]
  %s1 = inlined_call_operand.vmem [shape: s32[600,1], index: 1, kind: input, shape index: {}]
  %s2 = inlined_call_operand.vmem [shape: bf16[8,128], index: 2, kind: input, shape index: {}]
  %s3 = inlined_call_operand.vmem [shape: bf16[16,128], index: 3, kind: input, shape index: {}]
  %s4 = inlined_call_operand.vmem [shape: bf16[128,128], index: 4, kind: input, shape index: {}]
  %s5 = inlined_call_operand.vmem [shape: f32[1,128], index: 5, kind: input, shape index: {}]
  %s6 = inlined_call_operand.vmem [shape: bf16[128,8], index: 6, kind: input, shape index: {}]
  %s7 = inlined_call_operand.vmem [shape: f32[1,8], index: 7, kind: input, shape index: {}]
  %s8 = inlined_call_operand.vmem [shape: f32[600,8], index: 8, kind: output, shape index: {}]
  %s9 = sld [smem:[#allocation0]]
  $region113: #{encoder_forward.1} parent=0
    _
  %s11 = ssub.s32 1, %s9
  %s12 = scalar_select 0, %s11, %s9
  $region1: #{encoder_forward.1} parent=0
    #allocation2 [shape = 'u8[311296]{0}', space=vmem, size = 0x4c000, scoped, tag = 'output window, operand 0']
    loop: start=0, step=1, limit=4
    $region2: #{encoder_forward.1} parent=1 // loop_pre_header
      _
    $region3: #{encoder_forward.1} parent=1 // loop_header
      %s14 = sphi 0, %s18
      %p15 = scmp.ge.s32.totalorder %s14, 4
      %s24 = sphi 0, %s26
      %s27 = sphi 0, %s24
      %s28 = sphi 0, %s27
      %s44 = sphi 0, %s28
      %s50 = sphi 0, %s52
      %s53 = sphi 0, %s50
      %s54 = sphi 0, %s53
      %s70 = sphi 0, %s54
      %s74 = sphi 0, %s74
      %s76 = sphi 0, %s74
      %s77 = sphi 0, %s76
      %s91 = sphi 0, %s77
      %s95 = sphi 0, %s95
      %s97 = sphi 0, %s95
      %s98 = sphi 0, %s97
      %s112 = sphi 0, %s98
      %s116 = sphi 0, %s116
      %s118 = sphi 0, %s116
      %s119 = sphi 0, %s118
      %s133 = sphi 0, %s119
      %s137 = sphi 0, %s137
      %s139 = sphi 0, %s137
      %s140 = sphi 0, %s139
      %s154 = sphi 0, %s140
      %s158 = sphi 0, %s158
      %s160 = sphi 0, %s158
      %s161 = sphi 0, %s160
      %s175 = sphi 0, %s161
      %s179 = sphi 0, %s179
      %s181 = sphi 0, %s179
      %s182 = sphi 0, %s181
      %s196 = sphi 0, %s182
      %s202 = sphi 0, %s204
      %s205 = sphi 0, %s202
      %s206 = sphi 0, %s205
      %s222 = sphi 0, %s206
    $region4: #{encoder_forward.1} parent=1 // loop_header_branch
      %17 = sbr.rel (%p15) target = $region8
    $region5: #{encoder_forward.1} parent=1 // loop_body
      %s19 = ssub.s32 %s14, 1
      %s20 = ssub.s32 %s14, 2
      %s21 = sadd.s32 %s14, 1
      %s22 = ssub.s32 %s14, %s21
      %p23 = scmp.eq.s32.totalorder %s22, 0
      %s25 = sadd.s32 %s24, 1
      %s26 = scalar_select %p23, %s24, %s25
      %p29 = pneg %p23
      %p30 = scmp.eq.s32.totalorder %s14, 1
      %p31 = por %p29, %p30
      %p32 = scmp.ne.s32.totalorder %s24, %s27
      %p33 = scmp.eq.s32.totalorder %s14, 0
      %p34 = por %p32, %p33
      %p35 = scmp.ne.s32.totalorder %s24, %s27
      %p36 = scmp.eq.s32.totalorder %s19, 1
      %p37 = por %p35, %p36
      %p38 = scmp.ne.s32.totalorder %s27, %s28
      %p39 = scmp.eq.s32.totalorder %s19, 0
      %p40 = por %p38, %p39
      %p41 = scmp.ne.s32.totalorder %s27, %s28
      %p42 = scmp.eq.s32.totalorder %s20, 1
      %p43 = por %p41, %p42
      %p45 = scmp.ne.s32.totalorder %s28, %s44
      %p46 = scmp.eq.s32.totalorder %s20, 0
      %p47 = por %p45, %p46
      %s48 = ssub.s32 %s14, %s21
      %p49 = scmp.eq.s32.totalorder %s48, 0
      %s51 = sadd.s32 %s50, 1
      %s52 = scalar_select %p49, %s50, %s51
      %p55 = pneg %p49
      %p56 = scmp.eq.s32.totalorder %s14, 1
      %p57 = por %p55, %p56
      %p58 = scmp.ne.s32.totalorder %s50, %s53
      %p59 = scmp.eq.s32.totalorder %s14, 0
      %p60 = por %p58, %p59
      %p61 = scmp.ne.s32.totalorder %s50, %s53
      %p62 = scmp.eq.s32.totalorder %s19, 1
      %p63 = por %p61, %p62
      %p64 = scmp.ne.s32.totalorder %s53, %s54
      %p65 = scmp.eq.s32.totalorder %s19, 0
      %p66 = por %p64, %p65
      %p67 = scmp.ne.s32.totalorder %s53, %s54
      %p68 = scmp.eq.s32.totalorder %s20, 1
      %p69 = por %p67, %p68
      %p71 = scmp.ne.s32.totalorder %s54, %s70
      %p72 = scmp.eq.s32.totalorder %s20, 0
      %p73 = por %p71, %p72
      %s75 = sadd.s32 %s74, 1
      %p78 = scmp.eq.s32.totalorder %s14, 1
      %p79 = scmp.ne.s32.totalorder %s74, %s76
      %p80 = scmp.eq.s32.totalorder %s14, 0
      %p81 = por %p79, %p80
      %p82 = scmp.ne.s32.totalorder %s74, %s76
      %p83 = scmp.eq.s32.totalorder %s19, 1
      %p84 = por %p82, %p83
      %p85 = scmp.ne.s32.totalorder %s76, %s77
      %p86 = scmp.eq.s32.totalorder %s19, 0
      %p87 = por %p85, %p86
      %p88 = scmp.ne.s32.totalorder %s76, %s77
      %p89 = scmp.eq.s32.totalorder %s20, 1
      %p90 = por %p88, %p89
      %p92 = scmp.ne.s32.totalorder %s77, %s91
      %p93 = scmp.eq.s32.totalorder %s20, 0
      %p94 = por %p92, %p93
      %s96 = sadd.s32 %s95, 1
      %p99 = scmp.eq.s32.totalorder %s14, 1
      %p100 = scmp.ne.s32.totalorder %s95, %s97
      %p101 = scmp.eq.s32.totalorder %s14, 0
      %p102 = por %p100, %p101
      %p103 = scmp.ne.s32.totalorder %s95, %s97
      %p104 = scmp.eq.s32.totalorder %s19, 1
      %p105 = por %p103, %p104
      %p106 = scmp.ne.s32.totalorder %s97, %s98
      %p107 = scmp.eq.s32.totalorder %s19, 0
      %p108 = por %p106, %p107
      %p109 = scmp.ne.s32.totalorder %s97, %s98
      %p110 = scmp.eq.s32.totalorder %s20, 1
      %p111 = por %p109, %p110
      %p113 = scmp.ne.s32.totalorder %s98, %s112
      %p114 = scmp.eq.s32.totalorder %s20, 0
      %p115 = por %p113, %p114
      %s117 = sadd.s32 %s116, 1
      %p120 = scmp.eq.s32.totalorder %s14, 1
      %p121 = scmp.ne.s32.totalorder %s116, %s118
      %p122 = scmp.eq.s32.totalorder %s14, 0
      %p123 = por %p121, %p122
      %p124 = scmp.ne.s32.totalorder %s116, %s118
      %p125 = scmp.eq.s32.totalorder %s19, 1
      %p126 = por %p124, %p125
      %p127 = scmp.ne.s32.totalorder %s118, %s119
      %p128 = scmp.eq.s32.totalorder %s19, 0
      %p129 = por %p127, %p128
      %p130 = scmp.ne.s32.totalorder %s118, %s119
      %p131 = scmp.eq.s32.totalorder %s20, 1
      %p132 = por %p130, %p131
      %p134 = scmp.ne.s32.totalorder %s119, %s133
      %p135 = scmp.eq.s32.totalorder %s20, 0
      %p136 = por %p134, %p135
      %s138 = sadd.s32 %s137, 1
      %p141 = scmp.eq.s32.totalorder %s14, 1
      %p142 = scmp.ne.s32.totalorder %s137, %s139
      %p143 = scmp.eq.s32.totalorder %s14, 0
      %p144 = por %p142, %p143
      %p145 = scmp.ne.s32.totalorder %s137, %s139
      %p146 = scmp.eq.s32.totalorder %s19, 1
      %p147 = por %p145, %p146
      %p148 = scmp.ne.s32.totalorder %s139, %s140
      %p149 = scmp.eq.s32.totalorder %s19, 0
      %p150 = por %p148, %p149
      %p151 = scmp.ne.s32.totalorder %s139, %s140
      %p152 = scmp.eq.s32.totalorder %s20, 1
      %p153 = por %p151, %p152
      %p155 = scmp.ne.s32.totalorder %s140, %s154
      %p156 = scmp.eq.s32.totalorder %s20, 0
      %p157 = por %p155, %p156
      %s159 = sadd.s32 %s158, 1
      %p162 = scmp.eq.s32.totalorder %s14, 1
      %p163 = scmp.ne.s32.totalorder %s158, %s160
      %p164 = scmp.eq.s32.totalorder %s14, 0
      %p165 = por %p163, %p164
      %p166 = scmp.ne.s32.totalorder %s158, %s160
      %p167 = scmp.eq.s32.totalorder %s19, 1
      %p168 = por %p166, %p167
      %p169 = scmp.ne.s32.totalorder %s160, %s161
      %p170 = scmp.eq.s32.totalorder %s19, 0
      %p171 = por %p169, %p170
      %p172 = scmp.ne.s32.totalorder %s160, %s161
      %p173 = scmp.eq.s32.totalorder %s20, 1
      %p174 = por %p172, %p173
      %p176 = scmp.ne.s32.totalorder %s161, %s175
      %p177 = scmp.eq.s32.totalorder %s20, 0
      %p178 = por %p176, %p177
      %s180 = sadd.s32 %s179, 1
      %p183 = scmp.eq.s32.totalorder %s14, 1
      %p184 = scmp.ne.s32.totalorder %s179, %s181
      %p185 = scmp.eq.s32.totalorder %s14, 0
      %p186 = por %p184, %p185
      %p187 = scmp.ne.s32.totalorder %s179, %s181
      %p188 = scmp.eq.s32.totalorder %s19, 1
      %p189 = por %p187, %p188
      %p190 = scmp.ne.s32.totalorder %s181, %s182
      %p191 = scmp.eq.s32.totalorder %s19, 0
      %p192 = por %p190, %p191
      %p193 = scmp.ne.s32.totalorder %s181, %s182
      %p194 = scmp.eq.s32.totalorder %s20, 1
      %p195 = por %p193, %p194
      %p197 = scmp.ne.s32.totalorder %s182, %s196
      %p198 = scmp.eq.s32.totalorder %s20, 0
      %p199 = por %p197, %p198
      %s200 = ssub.s32 %s14, %s21
      %p201 = scmp.eq.s32.totalorder %s200, 0
      %s203 = sadd.s32 %s202, 1
      %s204 = scalar_select %p201, %s202, %s203
      %p207 = pneg %p201
      %p208 = scmp.eq.s32.totalorder %s14, 1
      %p209 = por %p207, %p208
      %p210 = scmp.ne.s32.totalorder %s202, %s205
      %p211 = scmp.eq.s32.totalorder %s14, 0
      %p212 = por %p210, %p211
      %p213 = scmp.ne.s32.totalorder %s202, %s205
      %p214 = scmp.eq.s32.totalorder %s19, 1
      %p215 = por %p213, %p214
      %p216 = scmp.ne.s32.totalorder %s205, %s206
      %p217 = scmp.eq.s32.totalorder %s19, 0
      %p218 = por %p216, %p217
      %p219 = scmp.ne.s32.totalorder %s205, %s206
      %p220 = scmp.eq.s32.totalorder %s20, 1
      %p221 = por %p219, %p220
      %p223 = scmp.ne.s32.totalorder %s206, %s222
      %p224 = scmp.eq.s32.totalorder %s20, 0
      %p225 = por %p223, %p224
      %p226 = scmp.le.s32.totalorder 1, %s14
      %p227 = scmp.lt.s32.totalorder %s14, 3
      %p228 = pnand %p226, %p227
      %p229 = pneg %p228
      // Predicated region
      $region9: #{encoder_forward.1} parent=5 // pred_check
        _
      $region10: #{encoder_forward.1} parent=5 // pred_check_branch
        %231 = sbr.rel (%p228) target = $region12
      $region11: #{encoder_forward.1} parent=5 // pred_region
        %s232 = ssub.s32 %s14, 1
        // Predicated region
        $region13: #{encoder_forward.1} parent=11 // pred_check
          %p233 = pneg %p87
        $region14: #{encoder_forward.1} parent=11 // pred_check_branch
          %235 = sbr.rel (%p233) target = $region16
        $region15: #{encoder_forward.1} parent=11 // pred_region
          _
        $region16: #{encoder_forward.1} parent=11 // pred_fallthru
          _
        // Predicated region
        $region17: #{encoder_forward.1} parent=11 // pred_check
          %p236 = pneg %p108
        $region18: #{encoder_forward.1} parent=11 // pred_check_branch
          %238 = sbr.rel (%p236) target = $region20
        $region19: #{encoder_forward.1} parent=11 // pred_region
          _
        $region20: #{encoder_forward.1} parent=11 // pred_fallthru
          _
        // Predicated region
        $region21: #{encoder_forward.1} parent=11 // pred_check
          %p239 = pneg %p129
        $region22: #{encoder_forward.1} parent=11 // pred_check_branch
          %241 = sbr.rel (%p239) target = $region24
        $region23: #{encoder_forward.1} parent=11 // pred_region
          _
        $region24: #{encoder_forward.1} parent=11 // pred_fallthru
          _
        // Predicated region
        $region25: #{encoder_forward.1} parent=11 // pred_check
          %p242 = pneg %p150
        $region26: #{encoder_forward.1} parent=11 // pred_check_branch
          %244 = sbr.rel (%p242) target = $region28
        $region27: #{encoder_forward.1} parent=11 // pred_region
          _
        $region28: #{encoder_forward.1} parent=11 // pred_fallthru
          _
        // Predicated region
        $region29: #{encoder_forward.1} parent=11 // pred_check
          %p245 = pneg %p171
        $region30: #{encoder_forward.1} parent=11 // pred_check_branch
          %247 = sbr.rel (%p245) target = $region32
        $region31: #{encoder_forward.1} parent=11 // pred_region
          _
        $region32: #{encoder_forward.1} parent=11 // pred_fallthru
          _
        // Predicated region
        $region33: #{encoder_forward.1} parent=11 // pred_check
          %p248 = pneg %p192
        $region34: #{encoder_forward.1} parent=11 // pred_check_branch
          %250 = sbr.rel (%p248) target = $region36
        $region35: #{encoder_forward.1} parent=11 // pred_region
          _
        $region36: #{encoder_forward.1} parent=11 // pred_fallthru
          _
      $region12: #{encoder_forward.1} parent=5 // pred_fallthru
        _
      %p251 = scmp.lt.s32.totalorder %s14, 2
      // Predicated region
      $region37: #{encoder_forward.1} parent=5 // pred_check
        %p252 = pneg %p251
      $region38: #{encoder_forward.1} parent=5 // pred_check_branch
        %254 = sbr.rel (%p252) target = $region40
      $region39: #{encoder_forward.1} parent=5 // pred_region
        // Predicated region
        $region41: #{encoder_forward.1} parent=39 // pred_check
          %p255 = pneg %p34
        $region42: #{encoder_forward.1} parent=39 // pred_check_branch
          %257 = sbr.rel (%p255) target = $region44
        $region43: #{encoder_forward.1} parent=39 // pred_region
          %s258 = smul.u32 38, %s14
          %s259 = ssub.s32 75, %s258
          %p260 = scmp.lt.s32.totalorder %s259, 38
          %s261 = scalar_select %p260, %s259, 38
          %s262 = smul.u32 128, %s261
          %p263 = scmp.lt.s32.totalorder %s258, 74
          %s264 = scalar_select %p263, %s258, 74
          %s265 = smul.addr %s264, 8
          %s266 = scalar_lea.vmem %s0, %s265
          %s267 = smul.u32 38, %s14
          %s268 = ssub.s32 75, %s267
          %p269 = scmp.lt.s32.totalorder %s268, 38
          %s270 = scalar_select %p269, %s268, 38
          %s271 = smul.u32 128, %s270
        $region44: #{encoder_forward.1} parent=39 // pred_fallthru
          _
        // Predicated region
        $region45: #{encoder_forward.1} parent=39 // pred_check
          %p272 = pneg %p60
        $region46: #{encoder_forward.1} parent=39 // pred_check_branch
          %274 = sbr.rel (%p272) target = $region48
        $region47: #{encoder_forward.1} parent=39 // pred_region
          %s275 = smul.u32 38, %s14
          %s276 = ssub.s32 75, %s275
          %p277 = scmp.lt.s32.totalorder %s276, 38
          %s278 = scalar_select %p277, %s276, 38
          %s279 = smul.u32 128, %s278
          %p280 = scmp.lt.s32.totalorder %s275, 74
          %s281 = scalar_select %p280, %s275, 74
          %s282 = smul.addr %s281, 8
          %s283 = scalar_lea.vmem %s1, %s282
          %s284 = smul.u32 38, %s14
          %s285 = ssub.s32 75, %s284
          %p286 = scmp.lt.s32.totalorder %s285, 38
          %s287 = scalar_select %p286, %s285, 38
          %s288 = smul.u32 128, %s287
        $region48: #{encoder_forward.1} parent=39 // pred_fallthru
          _
      $region40: #{encoder_forward.1} parent=5 // pred_fallthru
        _
      %p289 = scmp.le.s32.totalorder 1, %s14
      %p290 = scmp.lt.s32.totalorder %s14, 3
      %p291 = pnand %p289, %p290
      %p292 = pneg %p291
      // Predicated region
      $region49: #{encoder_forward.1} parent=5 // pred_check
        _
      $region50: #{encoder_forward.1} parent=5 // pred_check_branch
        %294 = sbr.rel (%p291) target = $region52
      $region51: #{encoder_forward.1} parent=5 // pred_region
        %s295 = ssub.s32 %s14, 1
        %s296 = smul.u32 38, %s19
        %s297 = ssub.s32 75, %s296
        %p298 = scmp.lt.s32.totalorder %s297, 38
        %s299 = scalar_select %p298, %s297, 38
        %s300 = smul.u32 128, %s299
        %p301 = scmp.lt.s32.totalorder %s296, 74
        %s302 = scalar_select %p301, %s296, 74
        %s303 = smul.addr %s302, 8
        %s304 = scalar_lea.vmem %s0, %s303
        %p305 = pneg %p40
        %p306 = pneg %p37
        %s307 = smul.u32 38, %s19
        %s308 = ssub.s32 75, %s307
        %p309 = scmp.lt.s32.totalorder %s308, 38
        %s310 = scalar_select %p309, %s308, 38
        %s311 = smul.u32 128, %s310
        %p312 = scmp.lt.s32.totalorder %s307, 74
        %s313 = scalar_select %p312, %s307, 74
        %s314 = smul.addr %s313, 8
        %s315 = scalar_lea.vmem %s1, %s314
        %p316 = pneg %p66
        %p317 = pneg %p63
        %p318 = pneg %p87
        %p319 = pneg %p84
        %p320 = pneg %p108
        %p321 = pneg %p105
        %p322 = pneg %p129
        %p323 = pneg %p126
        %p324 = pneg %p150
        %p325 = pneg %p147
        %p326 = pneg %p171
        %p327 = pneg %p168
        %p328 = pneg %p192
        %p329 = pneg %p189
        %p330 = pneg %p218
        %p331 = pneg %p215
        %s332 = sand.u32 %s205, 1
        %s333 = sand.u32 %s205, 1
        %s334 = smul.addr %s333, 304
        %s335 = scalar_lea.vmem [#allocation2], %s334
        %s336 = smul.u32 38, %s19
        %s337 = ssub.s32 75, %s336
        %p338 = scmp.lt.s32.totalorder %s337, 38
        %s339 = scalar_select %p338, %s337, 38
        %s340 = smul.u32 128, %s339
        %p341 = scmp.lt.s32.totalorder %s336, 74
        %s342 = scalar_select %p341, %s336, 74
        %s343 = smul.addr %s342, 8
        %s344 = scalar_lea.vmem %s0, %s343
        %s345 = smul.u32 38, %s19
        %s346 = ssub.s32 75, %s345
        %p347 = scmp.lt.s32.totalorder %s346, 38
        %s348 = scalar_select %p347, %s346, 38
        %s349 = smul.u32 128, %s348
        %s350 = smul.u32 38, %s19
        %s351 = ssub.s32 75, %s350
        %p352 = scmp.lt.s32.totalorder %s351, 38
        %s353 = scalar_select %p352, %s351, 38
        %s354 = smul.u32 128, %s353
        %p355 = scmp.lt.s32.totalorder %s350, 74
        %s356 = scalar_select %p355, %s350, 74
        %s357 = smul.addr %s356, 8
        %s358 = scalar_lea.vmem %s1, %s357
        %s359 = smul.u32 38, %s19
        %s360 = ssub.s32 75, %s359
        %p361 = scmp.lt.s32.totalorder %s360, 38
        %s362 = scalar_select %p361, %s360, 38
        %s363 = smul.u32 128, %s362
        %s364 = smul.u32 38, %s19
        %s365 = ssub.s32 75, %s364
        %p366 = scmp.lt.s32.totalorder %s365, 38
        %s367 = scalar_select %p366, %s365, 38
        %s368 = smul.u32 128, %s367
        %v370 = vld [vmem:[%s344] sm:$0xff]
        %v371 = vld [vmem:[%s344 + $0x8] sm:$0xff]
        %v372 = vld [vmem:[%s344 + $0x10] sm:$0xff]
        %v373 = vld [vmem:[%s344 + $0x18] sm:$0xff]
        %v374 = vld [vmem:[%s344 + $0x20] sm:$0xff]
        %v375 = vld [vmem:[%s344 + $0x28] sm:$0xff]
        %v376 = vld [vmem:[%s344 + $0x30] sm:$0xff]
        %v377 = vld [vmem:[%s344 + $0x38] sm:$0xff]
        %v378 = vld [vmem:[%s344 + $0x40] sm:$0xff]
        %v379 = vld [vmem:[%s344 + $0x48] sm:$0xff]
        %v380 = vld [vmem:[%s344 + $0x50] sm:$0xff]
        %v381 = vld [vmem:[%s344 + $0x58] sm:$0xff]
        %v382 = vld [vmem:[%s344 + $0x60] sm:$0xff]
        %v383 = vld [vmem:[%s344 + $0x68] sm:$0xff]
        %v384 = vld [vmem:[%s344 + $0x70] sm:$0xff]
        %v385 = vld [vmem:[%s344 + $0x78] sm:$0xff]
        %v386 = vld [vmem:[%s344 + $0x80] sm:$0xff]
        %v387 = vld [vmem:[%s344 + $0x88] sm:$0xff]
        %v388 = vld [vmem:[%s344 + $0x90] sm:$0xff]
        %v389 = vld [vmem:[%s344 + $0x98] sm:$0xff]
        %v390 = vld [vmem:[%s344 + $0xa0] sm:$0xff]
        %v391 = vld [vmem:[%s344 + $0xa8] sm:$0xff]
        %v392 = vld [vmem:[%s344 + $0xb0] sm:$0xff]
        %v393 = vld [vmem:[%s344 + $0xb8] sm:$0xff]
        %v394 = vld [vmem:[%s344 + $0xc0] sm:$0xff]
        %v395 = vld [vmem:[%s344 + $0xc8] sm:$0xff]
        %v396 = vld [vmem:[%s344 + $0xd0] sm:$0xff]
        %v397 = vld [vmem:[%s344 + $0xd8] sm:$0xff]
        %v398 = vld [vmem:[%s344 + $0xe0] sm:$0xff]
        %v399 = vld [vmem:[%s344 + $0xe8] sm:$0xff]
        %v400 = vld [vmem:[%s344 + $0xf0] sm:$0xff]
        %v401 = vld [vmem:[%s344 + $0xf8] sm:$0xff]
        %v402 = vld [vmem:[%s344 + $0x100] sm:$0xff]
        %v403 = vld [vmem:[%s344 + $0x108] sm:$0xff]
        %v404 = vld [vmem:[%s344 + $0x110] sm:$0xff]
        %v405 = vld [vmem:[%s344 + $0x118] sm:$0xff]
        %v406 = vld [vmem:[%s344 + $0x120] sm:$0xff]
        %v407 = vld [vmem:[%s344 + $0x128] sm:$0xff]
        %v408 = vpack.c.bf16 %v371, %v370
        %v409 = vpack.c.bf16 %v373, %v372
        %v410 = vpack.c.bf16 %v375, %v374
        %v411 = vpack.c.bf16 %v377, %v376
        %v412 = vpack.c.bf16 %v379, %v378
        %v413 = vpack.c.bf16 %v381, %v380
        %v414 = vpack.c.bf16 %v383, %v382
        %v415 = vpack.c.bf16 %v385, %v384
        %v416 = vpack.c.bf16 %v387, %v386
        %v417 = vpack.c.bf16 %v389, %v388
        %v418 = vpack.c.bf16 %v391, %v390
        %v419 = vpack.c.bf16 %v393, %v392
        %v420 = vpack.c.bf16 %v395, %v394
        %v421 = vpack.c.bf16 %v397, %v396
        %v422 = vpack.c.bf16 %v399, %v398
        %v423 = vpack.c.bf16 %v401, %v400
        %v424 = vpack.c.bf16 %v403, %v402
        %v425 = vpack.c.bf16 %v405, %v404
        %v426 = vpack.c.bf16 %v407, %v406
        %v427 = vld [vmem:[%s358] sm:$0xff]
        %v428 = vld [vmem:[%s358 + $0x8] sm:$0xff]
        %v429 = vld [vmem:[%s358 + $0x10] sm:$0xff]
        %v430 = vld [vmem:[%s358 + $0x18] sm:$0xff]
        %v431 = vld [vmem:[%s358 + $0x20] sm:$0xff]
        %v432 = vld [vmem:[%s358 + $0x28] sm:$0xff]
        %v433 = vld [vmem:[%s358 + $0x30] sm:$0xff]
        %v434 = vld [vmem:[%s358 + $0x38] sm:$0xff]
        %v435 = vld [vmem:[%s358 + $0x40] sm:$0xff]
        %v436 = vld [vmem:[%s358 + $0x48] sm:$0xff]
        %v437 = vld [vmem:[%s358 + $0x50] sm:$0xff]
        %v438 = vld [vmem:[%s358 + $0x58] sm:$0xff]
        %v439 = vld [vmem:[%s358 + $0x60] sm:$0xff]
        %v440 = vld [vmem:[%s358 + $0x68] sm:$0xff]
        %v441 = vld [vmem:[%s358 + $0x70] sm:$0xff]
        %v442 = vld [vmem:[%s358 + $0x78] sm:$0xff]
        %v443 = vld [vmem:[%s358 + $0x80] sm:$0xff]
        %v444 = vld [vmem:[%s358 + $0x88] sm:$0xff]
        %v445 = vld [vmem:[%s358 + $0x90] sm:$0xff]
        %v446 = vld [vmem:[%s358 + $0x98] sm:$0xff]
        %v447 = vld [vmem:[%s358 + $0xa0] sm:$0xff]
        %v448 = vld [vmem:[%s358 + $0xa8] sm:$0xff]
        %v449 = vld [vmem:[%s358 + $0xb0] sm:$0xff]
        %v450 = vld [vmem:[%s358 + $0xb8] sm:$0xff]
        %v451 = vld [vmem:[%s358 + $0xc0] sm:$0xff]
        %v452 = vld [vmem:[%s358 + $0xc8] sm:$0xff]
        %v453 = vld [vmem:[%s358 + $0xd0] sm:$0xff]
        %v454 = vld [vmem:[%s358 + $0xd8] sm:$0xff]
        %v455 = vld [vmem:[%s358 + $0xe0] sm:$0xff]
        %v456 = vld [vmem:[%s358 + $0xe8] sm:$0xff]
        %v457 = vld [vmem:[%s358 + $0xf0] sm:$0xff]
        %v458 = vld [vmem:[%s358 + $0xf8] sm:$0xff]
        %v459 = vld [vmem:[%s358 + $0x100] sm:$0xff]
        %v460 = vld [vmem:[%s358 + $0x108] sm:$0xff]
        %v461 = vld [vmem:[%s358 + $0x110] sm:$0xff]
        %v462 = vld [vmem:[%s358 + $0x118] sm:$0xff]
        %v463 = vld [vmem:[%s358 + $0x120] sm:$0xff]
        %v464 = vld [vmem:[%s358 + $0x128] sm:$0xff]
        %v465 = vlaneseq
        %v466 = vand.u32 %v465, 127
        %467 = vset.pattern.permute.xlu0 0
        %468 = vperm.xlu0 %467, %v427
        %v469 = vpop.permute.xlu0 %468
        %470 = vset.pattern.permute.xlu0 0
        %471 = vperm.xlu0 %470, %v428
        %v472 = vpop.permute.xlu0 %471
        %473 = vset.pattern.permute.xlu0 0
        %474 = vperm.xlu0 %473, %v429
        %v475 = vpop.permute.xlu0 %474
        %476 = vset.pattern.permute.xlu0 0
        %477 = vperm.xlu0 %476, %v430
        %v478 = vpop.permute.xlu0 %477
        %479 = vset.pattern.permute.xlu0 0
        %480 = vperm.xlu0 %479, %v431
        %v481 = vpop.permute.xlu0 %480
        %482 = vset.pattern.permute.xlu0 0
        %483 = vperm.xlu0 %482, %v432
        %v484 = vpop.permute.xlu0 %483
        %485 = vset.pattern.permute.xlu0 0
        %486 = vperm.xlu0 %485, %v433
        %v487 = vpop.permute.xlu0 %486
        %488 = vset.pattern.permute.xlu0 0
        %489 = vperm.xlu0 %488, %v434
        %v490 = vpop.permute.xlu0 %489
        %491 = vset.pattern.permute.xlu0 0
        %492 = vperm.xlu0 %491, %v435
        %v493 = vpop.permute.xlu0 %492
        %494 = vset.pattern.permute.xlu0 0
        %495 = vperm.xlu0 %494, %v436
        %v496 = vpop.permute.xlu0 %495
        %497 = vset.pattern.permute.xlu0 0
        %498 = vperm.xlu0 %497, %v437
        %v499 = vpop.permute.xlu0 %498
        %500 = vset.pattern.permute.xlu0 0
        %501 = vperm.xlu0 %500, %v438
        %v502 = vpop.permute.xlu0 %501
        %503 = vset.pattern.permute.xlu0 0
        %504 = vperm.xlu0 %503, %v439
        %v505 = vpop.permute.xlu0 %504
        %506 = vset.pattern.permute.xlu0 0
        %507 = vperm.xlu0 %506, %v440
        %v508 = vpop.permute.xlu0 %507
        %509 = vset.pattern.permute.xlu0 0
        %510 = vperm.xlu0 %509, %v441
        %v511 = vpop.permute.xlu0 %510
        %512 = vset.pattern.permute.xlu0 0
        %513 = vperm.xlu0 %512, %v442
        %v514 = vpop.permute.xlu0 %513
        %515 = vset.pattern.permute.xlu0 0
        %516 = vperm.xlu0 %515, %v443
        %v517 = vpop.permute.xlu0 %516
        %518 = vset.pattern.permute.xlu0 0
        %519 = vperm.xlu0 %518, %v444
        %v520 = vpop.permute.xlu0 %519
        %521 = vset.pattern.permute.xlu0 0
        %522 = vperm.xlu0 %521, %v445
        %v523 = vpop.permute.xlu0 %522
        %524 = vset.pattern.permute.xlu0 0
        %525 = vperm.xlu0 %524, %v446
        %v526 = vpop.permute.xlu0 %525
        %527 = vset.pattern.permute.xlu0 0
        %528 = vperm.xlu0 %527, %v447
        %v529 = vpop.permute.xlu0 %528
        %530 = vset.pattern.permute.xlu0 0
        %531 = vperm.xlu0 %530, %v448
        %v532 = vpop.permute.xlu0 %531
        %533 = vset.pattern.permute.xlu0 0
        %534 = vperm.xlu0 %533, %v449
        %v535 = vpop.permute.xlu0 %534
        %536 = vset.pattern.permute.xlu0 0
        %537 = vperm.xlu0 %536, %v450
        %v538 = vpop.permute.xlu0 %537
        %539 = vset.pattern.permute.xlu0 0
        %540 = vperm.xlu0 %539, %v451
        %v541 = vpop.permute.xlu0 %540
        %542 = vset.pattern.permute.xlu0 0
        %543 = vperm.xlu0 %542, %v452
        %v544 = vpop.permute.xlu0 %543
        %545 = vset.pattern.permute.xlu0 0
        %546 = vperm.xlu0 %545, %v453
        %v547 = vpop.permute.xlu0 %546
        %548 = vset.pattern.permute.xlu0 0
        %549 = vperm.xlu0 %548, %v454
        %v550 = vpop.permute.xlu0 %549
        %551 = vset.pattern.permute.xlu0 0
        %552 = vperm.xlu0 %551, %v455
        %v553 = vpop.permute.xlu0 %552
        %554 = vset.pattern.permute.xlu0 0
        %555 = vperm.xlu0 %554, %v456
        %v556 = vpop.permute.xlu0 %555
        %557 = vset.pattern.permute.xlu0 0
        %558 = vperm.xlu0 %557, %v457
        %v559 = vpop.permute.xlu0 %558
        %560 = vset.pattern.permute.xlu0 0
        %561 = vperm.xlu0 %560, %v458
        %v562 = vpop.permute.xlu0 %561
        %563 = vset.pattern.permute.xlu0 0
        %564 = vperm.xlu0 %563, %v459
        %v565 = vpop.permute.xlu0 %564
        %566 = vset.pattern.permute.xlu0 0
        %567 = vperm.xlu0 %566, %v460
        %v568 = vpop.permute.xlu0 %567
        %569 = vset.pattern.permute.xlu0 0
        %570 = vperm.xlu0 %569, %v461
        %v571 = vpop.permute.xlu0 %570
        %572 = vset.pattern.permute.xlu0 0
        %573 = vperm.xlu0 %572, %v462
        %v574 = vpop.permute.xlu0 %573
        %575 = vset.pattern.permute.xlu0 0
        %576 = vperm.xlu0 %575, %v463
        %v577 = vpop.permute.xlu0 %576
        %578 = vset.pattern.permute.xlu0 0
        %579 = vperm.xlu0 %578, %v464
        %v580 = vpop.permute.xlu0 %579
        %vm581 = vcmp.eq.s32.totalorder %v466, %v469
        %vm582 = vcmp.eq.s32.totalorder %v466, %v472
        %vm583 = vcmp.eq.s32.totalorder %v466, %v475
        %vm584 = vcmp.eq.s32.totalorder %v466, %v478
        %vm585 = vcmp.eq.s32.totalorder %v466, %v481
        %vm586 = vcmp.eq.s32.totalorder %v466, %v484
        %vm587 = vcmp.eq.s32.totalorder %v466, %v487
        %vm588 = vcmp.eq.s32.totalorder %v466, %v490
        %vm589 = vcmp.eq.s32.totalorder %v466, %v493
        %vm590 = vcmp.eq.s32.totalorder %v466, %v496
        %vm591 = vcmp.eq.s32.totalorder %v466, %v499
        %vm592 = vcmp.eq.s32.totalorder %v466, %v502
        %vm593 = vcmp.eq.s32.totalorder %v466, %v505
        %vm594 = vcmp.eq.s32.totalorder %v466, %v508
        %vm595 = vcmp.eq.s32.totalorder %v466, %v511
        %vm596 = vcmp.eq.s32.totalorder %v466, %v514
        %vm597 = vcmp.eq.s32.totalorder %v466, %v517
        %vm598 = vcmp.eq.s32.totalorder %v466, %v520
        %vm599 = vcmp.eq.s32.totalorder %v466, %v523
        %vm600 = vcmp.eq.s32.totalorder %v466, %v526
        %vm601 = vcmp.eq.s32.totalorder %v466, %v529
        %vm602 = vcmp.eq.s32.totalorder %v466, %v532
        %vm603 = vcmp.eq.s32.totalorder %v466, %v535
        %vm604 = vcmp.eq.s32.totalorder %v466, %v538
        %vm605 = vcmp.eq.s32.totalorder %v466, %v541
        %vm606 = vcmp.eq.s32.totalorder %v466, %v544
        %vm607 = vcmp.eq.s32.totalorder %v466, %v547
        %vm608 = vcmp.eq.s32.totalorder %v466, %v550
        %vm609 = vcmp.eq.s32.totalorder %v466, %v553
        %vm610 = vcmp.eq.s32.totalorder %v466, %v556
        %vm611 = vcmp.eq.s32.totalorder %v466, %v559
        %vm612 = vcmp.eq.s32.totalorder %v466, %v562
        %vm613 = vcmp.eq.s32.totalorder %v466, %v565
        %vm614 = vcmp.eq.s32.totalorder %v466, %v568
        %vm615 = vcmp.eq.s32.totalorder %v466, %v571
        %vm616 = vcmp.eq.s32.totalorder %v466, %v574
        %vm617 = vcmp.eq.s32.totalorder %v466, %v577
        %vm618 = vcmp.eq.s32.totalorder %v466, %v580
        %v619 = vsel %vm581, 1, 0
        %v620 = vsel %vm582, 1, 0
        %v621 = vsel %vm583, 1, 0
        %v622 = vsel %vm584, 1, 0
        %v623 = vsel %vm585, 1, 0
        %v624 = vsel %vm586, 1, 0
        %v625 = vsel %vm587, 1, 0
        %v626 = vsel %vm588, 1, 0
        %v627 = vsel %vm589, 1, 0
        %v628 = vsel %vm590, 1, 0
        %v629 = vsel %vm591, 1, 0
        %v630 = vsel %vm592, 1, 0
        %v631 = vsel %vm593, 1, 0
        %v632 = vsel %vm594, 1, 0
        %v633 = vsel %vm595, 1, 0
        %v634 = vsel %vm596, 1, 0
        %v635 = vsel %vm597, 1, 0
        %v636 = vsel %vm598, 1, 0
        %v637 = vsel %vm599, 1, 0
        %v638 = vsel %vm600, 1, 0
        %v639 = vsel %vm601, 1, 0
        %v640 = vsel %vm602, 1, 0
        %v641 = vsel %vm603, 1, 0
        %v642 = vsel %vm604, 1, 0
        %v643 = vsel %vm605, 1, 0
        %v644 = vsel %vm606, 1, 0
        %v645 = vsel %vm607, 1, 0
        %v646 = vsel %vm608, 1, 0
        %v647 = vsel %vm609, 1, 0
        %v648 = vsel %vm610, 1, 0
        %v649 = vsel %vm611, 1, 0
        %v650 = vsel %vm612, 1, 0
        %v651 = vsel %vm613, 1, 0
        %v652 = vsel %vm614, 1, 0
        %v653 = vsel %vm615, 1, 0
        %v654 = vsel %vm616, 1, 0
        %v655 = vsel %vm617, 1, 0
        %v656 = vsel %vm618, 1, 0
        %v657 = vcvt.s32.f32 %v619
        %v658 = vcvt.s32.f32 %v620
        %v659 = vcvt.s32.f32 %v621
        %v660 = vcvt.s32.f32 %v622
        %v661 = vcvt.s32.f32 %v623
        %v662 = vcvt.s32.f32 %v624
        %v663 = vcvt.s32.f32 %v625
        %v664 = vcvt.s32.f32 %v626
        %v665 = vcvt.s32.f32 %v627
        %v666 = vcvt.s32.f32 %v628
        %v667 = vcvt.s32.f32 %v629
        %v668 = vcvt.s32.f32 %v630
        %v669 = vcvt.s32.f32 %v631
        %v670 = vcvt.s32.f32 %v632
        %v671 = vcvt.s32.f32 %v633
        %v672 = vcvt.s32.f32 %v634
        %v673 = vcvt.s32.f32 %v635
        %v674 = vcvt.s32.f32 %v636
        %v675 = vcvt.s32.f32 %v637
        %v676 = vcvt.s32.f32 %v638
        %v677 = vcvt.s32.f32 %v639
        %v678 = vcvt.s32.f32 %v640
        %v679 = vcvt.s32.f32 %v641
        %v680 = vcvt.s32.f32 %v642
        %v681 = vcvt.s32.f32 %v643
        %v682 = vcvt.s32.f32 %v644
        %v683 = vcvt.s32.f32 %v645
        %v684 = vcvt.s32.f32 %v646
        %v685 = vcvt.s32.f32 %v647
        %v686 = vcvt.s32.f32 %v648
        %v687 = vcvt.s32.f32 %v649
        %v688 = vcvt.s32.f32 %v650
        %v689 = vcvt.s32.f32 %v651
        %v690 = vcvt.s32.f32 %v652
        %v691 = vcvt.s32.f32 %v653
        %v692 = vcvt.s32.f32 %v654
        %v693 = vcvt.s32.f32 %v655
        %v694 = vcvt.s32.f32 %v656
        %v695 = vpack.c.bf16 %v658, %v657
        %v696 = vpack.c.bf16 %v660, %v659
        %v697 = vpack.c.bf16 %v662, %v661
        %v698 = vpack.c.bf16 %v664, %v663
        %v699 = vpack.c.bf16 %v666, %v665
        %v700 = vpack.c.bf16 %v668, %v667
        %v701 = vpack.c.bf16 %v670, %v669
        %v702 = vpack.c.bf16 %v672, %v671
        %v703 = vpack.c.bf16 %v674, %v673
        %v704 = vpack.c.bf16 %v676, %v675
        %v705 = vpack.c.bf16 %v678, %v677
        %v706 = vpack.c.bf16 %v680, %v679
        %v707 = vpack.c.bf16 %v682, %v681
        %v708 = vpack.c.bf16 %v684, %v683
        %v709 = vpack.c.bf16 %v686, %v685
        %v710 = vpack.c.bf16 %v688, %v687
        %v711 = vpack.c.bf16 %v690, %v689
        %v712 = vpack.c.bf16 %v692, %v691
        %v713 = vpack.c.bf16 %v694, %v693
        %v714 = vld [vmem:[%s3] sm:$0xf]
        %v715 = vld [vmem:[%s3 + $0x4] sm:$0xf]
        %v716 = vld [vmem:[%s2] sm:$0xf]
        %vm717 = vcmask 64512
        %v719 = vsel %vm717, %v695, 0
        %v722 = vsel %vm717, %v696, 0
        %v725 = vsel %vm717, %v697, 0
        %v728 = vsel %vm717, %v698, 0
        %v731 = vsel %vm717, %v699, 0
        %v734 = vsel %vm717, %v700, 0
        %v737 = vsel %vm717, %v701, 0
        %v740 = vsel %vm717, %v702, 0
        %v743 = vsel %vm717, %v703, 0
        %v746 = vsel %vm717, %v704, 0
        %v749 = vsel %vm717, %v705, 0
        %v752 = vsel %vm717, %v706, 0
        %v755 = vsel %vm717, %v707, 0
        %v758 = vsel %vm717, %v708, 0
        %v761 = vsel %vm717, %v709, 0
        %v764 = vsel %vm717, %v710, 0
        %v767 = vsel %vm717, %v711, 0
        %v770 = vsel %vm717, %v712, 0
        %v773 = vsel %vm717, %v713, 0
        %vm775 = vcmask 1043456
        %v777 = vsel %vm775, %v716, 0
        %779 = vmatprep.subr.bf16.mxu0 0
        %780 = vmatpush1.bf16.msra.mxu0 %v777
        %781 = vmatprep.subr.bf16.mxu0 0
        %782 = vmatpush1.bf16.msra.mxu0 0
        %783 = vmatprep.subr.bf16.mxu0 0
        %784 = vmatpush1.bf16.msra.mxu0 0
        %785 = vmatprep.subr.bf16.mxu0 0
        %786 = vmatpush1.bf16.msra.mxu0 0
        %787 = vmatprep.subr.bf16.mxu0 0
        %788 = vmatpush1.bf16.msra.mxu0 0
        %789 = vmatprep.subr.bf16.mxu0 0
        %790 = vmatpush1.bf16.msra.mxu0 0
        %791 = vmatprep.subr.bf16.mxu0 0
        %792 = vmatpush1.bf16.msra.mxu0 0
        %793 = vmatprep.subr.bf16.mxu0 0
        %794 = vmatpush1.bf16.msra.mxu0 0
        %795 = vmatprep.subr.bf16.mxu0 0
        %796 = vmatpush1.bf16.msra.mxu0 0
        %797 = vmatprep.subr.bf16.mxu0 0
        %798 = vmatpush1.bf16.msra.mxu0 0
        %799 = vmatprep.subr.bf16.mxu0 0
        %800 = vmatpush1.bf16.msra.mxu0 0
        %801 = vmatprep.subr.bf16.mxu0 0
        %802 = vmatpush1.bf16.msra.mxu0 0
        %803 = vmatprep.subr.bf16.mxu0 0
        %804 = vmatpush1.bf16.msra.mxu0 0
        %805 = vmatprep.subr.bf16.mxu0 0
        %806 = vmatpush1.bf16.msra.mxu0 0
        %807 = vmatprep.subr.bf16.mxu0 0
        %808 = vmatpush1.bf16.msra.mxu0 0
        %809 = vmatprep.subr.bf16.mxu0 0
        %810 = vmatpush1.bf16.msra.mxu0 0
        %811 = vmatprep.mubr.bf16.mxu0 0
        %812 = vmatmul.mubr.bf16.gmra.mrb[0].mxu0 %v719
        %v813 = vpop.f32.mrb[0].mxu0
        %v814 = vadd.f32 0.0, %v813
        %v815 = vpop.f32.mrb[0].mxu0
        %v816 = vpop.f32.mrb[0].mxu0
        %v817 = vadd.f32 0.0, %v816
        %v818 = vpop.f32.mrb[0].mxu0
        %819 = vmatprep.mubr.bf16.mxu0 0
        %820 = vmatmul.mubr.bf16.gmra.mrb[0].mxu0 %v722
        %v821 = vpop.f32.mrb[0].mxu0
        %v822 = vadd.f32 0.0, %v821
        %v823 = vpop.f32.mrb[0].mxu0
        %v824 = vpop.f32.mrb[0].mxu0
        %v825 = vadd.f32 0.0, %v824
        %v826 = vpop.f32.mrb[0].mxu0
        %827 = vmatprep.mubr.bf16.mxu0 0
        %828 = vmatmul.mubr.bf16.gmra.mrb[0].mxu0 %v725
        %v829 = vpop.f32.mrb[0].mxu0
        %v830 = vadd.f32 0.0, %v829
        %v831 = vpop.f32.mrb[0].mxu0
        %v832 = vpop.f32.mrb[0].mxu0
        %v833 = vadd.f32 0.0, %v832
        %v834 = vpop.f32.mrb[0].mxu0
        %835 = vmatprep.mubr.bf16.mxu0 0
        %836 = vmatmul.mubr.bf16.gmra.mrb[0].mxu0 %v728
        %v837 = vpop.f32.mrb[0].mxu0
        %v838 = vadd.f32 0.0, %v837
        %v839 = vpop.f32.mrb[0].mxu0
        %v840 = vpop.f32.mrb[0].mxu0
        %v841 = vadd.f32 0.0, %v840
        %v842 = vpop.f32.mrb[0].mxu0
        %843 = vmatprep.mubr.bf16.mxu0 0
        %844 = vmatmul.mubr.bf16.gmra.mrb[0].mxu0 %v731
        %v845 = vpop.f32.mrb[0].mxu0
        %v846 = vadd.f32 0.0, %v845
        %v847 = vpop.f32.mrb[0].mxu0
        %v848 = vpop.f32.mrb[0].mxu0
        %v849 = vadd.f32 0.0, %v848
        %v850 = vpop.f32.mrb[0].mxu0
        %851 = vmatprep.mubr.bf16.mxu0 0
        %852 = vmatmul.mubr.bf16.gmra.mrb[0].mxu0 %v734
        %v853 = vpop.f32.mrb[0].mxu0
        %v854 = vadd.f32 0.0, %v853
        %v855 = vpop.f32.mrb[0].mxu0
        %v856 = vpop.f32.mrb[0].mxu0
        %v857 = vadd.f32 0.0, %v856
        %v858 = vpop.f32.mrb[0].mxu0
        %859 = vmatprep.mubr.bf16.mxu0 0
        %860 = vmatmul.mubr.bf16.gmra.mrb[0].mxu0 %v737
        %v861 = vpop.f32.mrb[0].mxu0
        %v862 = vadd.f32 0.0, %v861
        %v863 = vpop.f32.mrb[0].mxu0
        %v864 = vpop.f32.mrb[0].mxu0
        %v865 = vadd.f32 0.0, %v864
        %v866 = vpop.f32.mrb[0].mxu0
        %867 = vmatprep.mubr.bf16.mxu0 0
        %868 = vmatmul.mubr.bf16.gmra.mrb[0].mxu0 %v740
        %v869 = vpop.f32.mrb[0].mxu0
        %v870 = vadd.f32 0.0, %v869
        %v871 = vpop.f32.mrb[0].mxu0
        %v872 = vpop.f32.mrb[0].mxu0
        %v873 = vadd.f32 0.0, %v872
        %v874 = vpop.f32.mrb[0].mxu0
        %875 = vmatprep.mubr.bf16.mxu0 0
        %876 = vmatmul.mubr.bf16.gmra.mrb[0].mxu0 %v743
        %v877 = vpop.f32.mrb[0].mxu0
        %v878 = vadd.f32 0.0, %v877
        %v879 = vpop.f32.mrb[0].mxu0
        %v880 = vpop.f32.mrb[0].mxu0
        %v881 = vadd.f32 0.0, %v880
        %v882 = vpop.f32.mrb[0].mxu0
        %883 = vmatprep.mubr.bf16.mxu0 0
        %884 = vmatmul.mubr.bf16.gmra.mrb[0].mxu0 %v746
        %v885 = vpop.f32.mrb[0].mxu0
        %v886 = vadd.f32 0.0, %v885
        %v887 = vpop.f32.mrb[0].mxu0
        %v888 = vpop.f32.mrb[0].mxu0
        %v889 = vadd.f32 0.0, %v888
        %v890 = vpop.f32.mrb[0].mxu0
        %891 = vmatprep.mubr.bf16.mxu0 0
        %892 = vmatmul.mubr.bf16.gmra.mrb[0].mxu0 %v749
        %v893 = vpop.f32.mrb[0].mxu0
        %v894 = vadd.f32 0.0, %v893
        %v895 = vpop.f32.mrb[0].mxu0
        %v896 = vpop.f32.mrb[0].mxu0
        %v897 = vadd.f32 0.0, %v896
        %v898 = vpop.f32.mrb[0].mxu0
        %899 = vmatprep.mubr.bf16.mxu0 0
        %900 = vmatmul.mubr.bf16.gmra.mrb[0].mxu0 %v752
        %v901 = vpop.f32.mrb[0].mxu0
        %v902 = vadd.f32 0.0, %v901
        %v903 = vpop.f32.mrb[0].mxu0
        %v904 = vpop.f32.mrb[0].mxu0
        %v905 = vadd.f32 0.0, %v904
        %v906 = vpop.f32.mrb[0].mxu0
        %907 = vmatprep.mubr.bf16.mxu0 0
        %908 = vmatmul.mubr.bf16.gmra.mrb[0].mxu0 %v755
        %v909 = vpop.f32.mrb[0].mxu0
        %v910 = vadd.f32 0.0, %v909
        %v911 = vpop.f32.mrb[0].mxu0
        %v912 = vpop.f32.mrb[0].mxu0
        %v913 = vadd.f32 0.0, %v912
        %v914 = vpop.f32.mrb[0].mxu0
        %915 = vmatprep.mubr.bf16.mxu0 0
        %916 = vmatmul.mubr.bf16.gmra.mrb[0].mxu0 %v758
        %v917 = vpop.f32.mrb[0].mxu0
        %v918 = vadd.f32 0.0, %v917
        %v919 = vpop.f32.mrb[0].mxu0
        %v920 = vpop.f32.mrb[0].mxu0
        %v921 = vadd.f32 0.0, %v920
        %v922 = vpop.f32.mrb[0].mxu0
        %923 = vmatprep.mubr.bf16.mxu0 0
        %924 = vmatmul.mubr.bf16.gmra.mrb[0].mxu0 %v761
        %v925 = vpop.f32.mrb[0].mxu0
        %v926 = vadd.f32 0.0, %v925
        %v927 = vpop.f32.mrb[0].mxu0
        %v928 = vpop.f32.mrb[0].mxu0
        %v929 = vadd.f32 0.0, %v928
        %v930 = vpop.f32.mrb[0].mxu0
        %931 = vmatprep.mubr.bf16.mxu0 0
        %932 = vmatmul.mubr.bf16.gmra.mrb[0].mxu0 %v764
        %v933 = vpop.f32.mrb[0].mxu0
        %v934 = vadd.f32 0.0, %v933
        %v935 = vpop.f32.mrb[0].mxu0
        %v936 = vpop.f32.mrb[0].mxu0
        %v937 = vadd.f32 0.0, %v936
        %v938 = vpop.f32.mrb[0].mxu0
        %939 = vmatprep.mubr.bf16.mxu0 0
        %940 = vmatmul.mubr.bf16.gmra.mrb[0].mxu0 %v767
        %v941 = vpop.f32.mrb[0].mxu0
        %v942 = vadd.f32 0.0, %v941
        %v943 = vpop.f32.mrb[0].mxu0
        %v944 = vpop.f32.mrb[0].mxu0
        %v945 = vadd.f32 0.0, %v944
        %v946 = vpop.f32.mrb[0].mxu0
        %947 = vmatprep.mubr.bf16.mxu0 0
        %948 = vmatmul.mubr.bf16.gmra.mrb[0].mxu0 %v770
        %v949 = vpop.f32.mrb[0].mxu0
        %v950 = vadd.f32 0.0, %v949
        %v951 = vpop.f32.mrb[0].mxu0
        %v952 = vpop.f32.mrb[0].mxu0
        %v953 = vadd.f32 0.0, %v952
        %v954 = vpop.f32.mrb[0].mxu0
        %955 = vmatprep.mubr.bf16.mxu0 0
        %956 = vmatmul.mubr.bf16.gmra.mrb[0].mxu0 %v773
        %v957 = vpop.f32.mrb[0].mxu0
        %v958 = vadd.f32 0.0, %v957
        %v959 = vpop.f32.mrb[0].mxu0
        %v960 = vpop.f32.mrb[0].mxu0
        %v961 = vadd.f32 0.0, %v960
        %v962 = vpop.f32.mrb[0].mxu0
        %963 = vdwg.mxu0
        %v966 = vunpack.c.l.b16 %v714
        %v967 = vunpack.c.l.b16 %v715
        %v968 = vpack.c.b16 %v967, %v966
        %vm970 = vcmask 130048
        %v972 = vsel %vm970, %v408, 0
        %v975 = vsel %vm970, %v409, 0
        %v978 = vsel %vm970, %v410, 0
        %v981 = vsel %vm970, %v411, 0
        %v984 = vsel %vm970, %v412, 0
        %v987 = vsel %vm970, %v413, 0
        %v990 = vsel %vm970, %v414, 0
        %v993 = vsel %vm970, %v415, 0
        %v996 = vsel %vm970, %v416, 0
        %v999 = vsel %vm970, %v417, 0
        %v1002 = vsel %vm970, %v418, 0
        %v1005 = vsel %vm970, %v419, 0
        %v1008 = vsel %vm970, %v420, 0
        %v1011 = vsel %vm970, %v421, 0
        %v1014 = vsel %vm970, %v422, 0
        %v1017 = vsel %vm970, %v423, 0
        %v1020 = vsel %vm970, %v424, 0
        %v1023 = vsel %vm970, %v425, 0
        %v1026 = vsel %vm970, %v426, 0
        %1028 = vmatprep.subr.bf16.mxu0 0
        %1029 = vmatpush1.bf16.msra.mxu0 %v968
        %1030 = vmatprep.subr.bf16.mxu0 0
        %1031 = vmatpush1.bf16.msra.mxu0 0
        %1032 = vmatprep.subr.bf16.mxu0 0
        %1033 = vmatpush1.bf16.msra.mxu0 0
        %1034 = vmatprep.subr.bf16.mxu0 0
        %1035 = vmatpush1.bf16.msra.mxu0 0
        %1036 = vmatprep.subr.bf16.mxu0 0
        %1037 = vmatpush1.bf16.msra.mxu0 0
        %1038 = vmatprep.subr.bf16.mxu0 0
        %1039 = vmatpush1.bf16.msra.mxu0 0
        %1040 = vmatprep.subr.bf16.mxu0 0
        %1041 = vmatpush1.bf16.msra.mxu0 0
        %1042 = vmatprep.subr.bf16.mxu0 0
        %1043 = vmatpush1.bf16.msra.mxu0 0
        %1044 = vmatprep.subr.bf16.mxu0 0
        %1045 = vmatpush1.bf16.msra.mxu0 0
        %1046 = vmatprep.subr.bf16.mxu0 0
        %1047 = vmatpush1.bf16.msra.mxu0 0
        %1048 = vmatprep.subr.bf16.mxu0 0
        %1049 = vmatpush1.bf16.msra.mxu0 0
        %1050 = vmatprep.subr.bf16.mxu0 0
        %1051 = vmatpush1.bf16.msra.mxu0 0
        %1052 = vmatprep.subr.bf16.mxu0 0
        %1053 = vmatpush1.bf16.msra.mxu0 0
        %1054 = vmatprep.subr.bf16.mxu0 0
        %1055 = vmatpush1.bf16.msra.mxu0 0
        %1056 = vmatprep.subr.bf16.mxu0 0
        %1057 = vmatpush1.bf16.msra.mxu0 0
        %1058 = vmatprep.subr.bf16.mxu0 0
        %1059 = vmatpush1.bf16.msra.mxu0 0
        %1060 = vmatprep.mubr.bf16.mxu0 0
        %1061 = vmatmul.mubr.bf16.gmra.mrb[0].mxu0 %v972
        %v1062 = vpop.f32.mrb[0].mxu0
        %v1063 = vadd.f32 %v814, %v1062
        %v1064 = vpop.f32.mrb[0].mxu0
        %v1065 = vpop.f32.mrb[0].mxu0
        %v1066 = vadd.f32 %v817, %v1065
        %v1067 = vpop.f32.mrb[0].mxu0
        %1068 = vmatprep.mubr.bf16.mxu0 0
        %1069 = vmatmul.mubr.bf16.gmra.mrb[0].mxu0 %v975
        %v1070 = vpop.f32.mrb[0].mxu0
        %v1071 = vadd.f32 %v822, %v1070
        %v1072 = vpop.f32.mrb[0].mxu0
        %v1073 = vpop.f32.mrb[0].mxu0
        %v1074 = vadd.f32 %v825, %v1073
        %v1075 = vpop.f32.mrb[0].mxu0
        %1076 = vmatprep.mubr.bf16.mxu0 0
        %1077 = vmatmul.mubr.bf16.gmra.mrb[0].mxu0 %v978
        %v1078 = vpop.f32.mrb[0].mxu0
        %v1079 = vadd.f32 %v830, %v1078
        %v1080 = vpop.f32.mrb[0].mxu0
        %v1081 = vpop.f32.mrb[0].mxu0
        %v1082 = vadd.f32 %v833, %v1081
        %v1083 = vpop.f32.mrb[0].mxu0
        %1084 = vmatprep.mubr.bf16.mxu0 0
        %1085 = vmatmul.mubr.bf16.gmra.mrb[0].mxu0 %v981
        %v1086 = vpop.f32.mrb[0].mxu0
        %v1087 = vadd.f32 %v838, %v1086
        %v1088 = vpop.f32.mrb[0].mxu0
        %v1089 = vpop.f32.mrb[0].mxu0
        %v1090 = vadd.f32 %v841, %v1089
        %v1091 = vpop.f32.mrb[0].mxu0
        %1092 = vmatprep.mubr.bf16.mxu0 0
        %1093 = vmatmul.mubr.bf16.gmra.mrb[0].mxu0 %v984
        %v1094 = vpop.f32.mrb[0].mxu0
        %v1095 = vadd.f32 %v846, %v1094
        %v1096 = vpop.f32.mrb[0].mxu0
        %v1097 = vpop.f32.mrb[0].mxu0
        %v1098 = vadd.f32 %v849, %v1097
        %v1099 = vpop.f32.mrb[0].mxu0
        %1100 = vmatprep.mubr.bf16.mxu0 0
        %1101 = vmatmul.mubr.bf16.gmra.mrb[0].mxu0 %v987
        %v1102 = vpop.f32.mrb[0].mxu0
        %v1103 = vadd.f32 %v854, %v1102
        %v1104 = vpop.f32.mrb[0].mxu0
        %v1105 = vpop.f32.mrb[0].mxu0
        %v1106 = vadd.f32 %v857, %v1105
        %v1107 = vpop.f32.mrb[0].mxu0
        %1108 = vmatprep.mubr.bf16.mxu0 0
        %1109 = vmatmul.mubr.bf16.gmra.mrb[0].mxu0 %v990
        %v1110 = vpop.f32.mrb[0].mxu0
        %v1111 = vadd.f32 %v862, %v1110
        %v1112 = vpop.f32.mrb[0].mxu0
        %v1113 = vpop.f32.mrb[0].mxu0
        %v1114 = vadd.f32 %v865, %v1113
        %v1115 = vpop.f32.mrb[0].mxu0
        %1116 = vmatprep.mubr.bf16.mxu0 0
        %1117 = vmatmul.mubr.bf16.gmra.mrb[0].mxu0 %v993
        %v1118 = vpop.f32.mrb[0].mxu0
        %v1119 = vadd.f32 %v870, %v1118
        %v1120 = vpop.f32.mrb[0].mxu0
        %v1121 = vpop.f32.mrb[0].mxu0
        %v1122 = vadd.f32 %v873, %v1121
        %v1123 = vpop.f32.mrb[0].mxu0
        %1124 = vmatprep.mubr.bf16.mxu0 0
        %1125 = vmatmul.mubr.bf16.gmra.mrb[0].mxu0 %v996
        %v1126 = vpop.f32.mrb[0].mxu0
        %v1127 = vadd.f32 %v878, %v1126
        %v1128 = vpop.f32.mrb[0].mxu0
        %v1129 = vpop.f32.mrb[0].mxu0
        %v1130 = vadd.f32 %v881, %v1129
        %v1131 = vpop.f32.mrb[0].mxu0
        %1132 = vmatprep.mubr.bf16.mxu0 0
        %1133 = vmatmul.mubr.bf16.gmra.mrb[0].mxu0 %v999
        %v1134 = vpop.f32.mrb[0].mxu0
        %v1135 = vadd.f32 %v886, %v1134
        %v1136 = vpop.f32.mrb[0].mxu0
        %v1137 = vpop.f32.mrb[0].mxu0
        %v1138 = vadd.f32 %v889, %v1137
        %v1139 = vpop.f32.mrb[0].mxu0
        %1140 = vmatprep.mubr.bf16.mxu0 0
        %1141 = vmatmul.mubr.bf16.gmra.mrb[0].mxu0 %v1002
        %v1142 = vpop.f32.mrb[0].mxu0
        %v1143 = vadd.f32 %v894, %v1142
        %v1144 = vpop.f32.mrb[0].mxu0
        %v1145 = vpop.f32.mrb[0].mxu0
        %v1146 = vadd.f32 %v897, %v1145
        %v1147 = vpop.f32.mrb[0].mxu0
        %1148 = vmatprep.mubr.bf16.mxu0 0
        %1149 = vmatmul.mubr.bf16.gmra.mrb[0].mxu0 %v1005
        %v1150 = vpop.f32.mrb[0].mxu0
        %v1151 = vadd.f32 %v902, %v1150
        %v1152 = vpop.f32.mrb[0].mxu0
        %v1153 = vpop.f32.mrb[0].mxu0
        %v1154 = vadd.f32 %v905, %v1153
        %v1155 = vpop.f32.mrb[0].mxu0
        %1156 = vmatprep.mubr.bf16.mxu0 0
        %1157 = vmatmul.mubr.bf16.gmra.mrb[0].mxu0 %v1008
        %v1158 = vpop.f32.mrb[0].mxu0
        %v1159 = vadd.f32 %v910, %v1158
        %v1160 = vpop.f32.mrb[0].mxu0
        %v1161 = vpop.f32.mrb[0].mxu0
        %v1162 = vadd.f32 %v913, %v1161
        %v1163 = vpop.f32.mrb[0].mxu0
        %1164 = vmatprep.mubr.bf16.mxu0 0
        %1165 = vmatmul.mubr.bf16.gmra.mrb[0].mxu0 %v1011
        %v1166 = vpop.f32.mrb[0].mxu0
        %v1167 = vadd.f32 %v918, %v1166
        %v1168 = vpop.f32.mrb[0].mxu0
        %v1169 = vpop.f32.mrb[0].mxu0
        %v1170 = vadd.f32 %v921, %v1169
        %v1171 = vpop.f32.mrb[0].mxu0
        %1172 = vmatprep.mubr.bf16.mxu0 0
        %1173 = vmatmul.mubr.bf16.gmra.mrb[0].mxu0 %v1014
        %v1174 = vpop.f32.mrb[0].mxu0
        %v1175 = vadd.f32 %v926, %v1174
        %v1176 = vpop.f32.mrb[0].mxu0
        %v1177 = vpop.f32.mrb[0].mxu0
        %v1178 = vadd.f32 %v929, %v1177
        %v1179 = vpop.f32.mrb[0].mxu0
        %1180 = vmatprep.mubr.bf16.mxu0 0
        %1181 = vmatmul.mubr.bf16.gmra.mrb[0].mxu0 %v1017
        %v1182 = vpop.f32.mrb[0].mxu0
        %v1183 = vadd.f32 %v934, %v1182
        %v1184 = vpop.f32.mrb[0].mxu0
        %v1185 = vpop.f32.mrb[0].mxu0
        %v1186 = vadd.f32 %v937, %v1185
        %v1187 = vpop.f32.mrb[0].mxu0
        %1188 = vmatprep.mubr.bf16.mxu0 0
        %1189 = vmatmul.mubr.bf16.gmra.mrb[0].mxu0 %v1020
        %v1190 = vpop.f32.mrb[0].mxu0
        %v1191 = vadd.f32 %v942, %v1190
        %v1192 = vpop.f32.mrb[0].mxu0
        %v1193 = vpop.f32.mrb[0].mxu0
        %v1194 = vadd.f32 %v945, %v1193
        %v1195 = vpop.f32.mrb[0].mxu0
        %1196 = vmatprep.mubr.bf16.mxu0 0
        %1197 = vmatmul.mubr.bf16.gmra.mrb[0].mxu0 %v1023
        %v1198 = vpop.f32.mrb[0].mxu0
        %v1199 = vadd.f32 %v950, %v1198
        %v1200 = vpop.f32.mrb[0].mxu0
        %v1201 = vpop.f32.mrb[0].mxu0
        %v1202 = vadd.f32 %v953, %v1201
        %v1203 = vpop.f32.mrb[0].mxu0
        %1204 = vmatprep.mubr.bf16.mxu0 0
        %1205 = vmatmul.mubr.bf16.gmra.mrb[0].mxu0 %v1026
        %v1206 = vpop.f32.mrb[0].mxu0
        %v1207 = vadd.f32 %v958, %v1206
        %v1208 = vpop.f32.mrb[0].mxu0
        %v1209 = vpop.f32.mrb[0].mxu0
        %v1210 = vadd.f32 %v961, %v1209
        %v1211 = vpop.f32.mrb[0].mxu0
        %1212 = vdwg.mxu0
        %v1213 = vmax.f32 %v1063, 0.0
        %v1214 = vmax.f32 %v1066, 0.0
        %v1215 = vmax.f32 %v1071, 0.0
        %v1216 = vmax.f32 %v1074, 0.0
        %v1217 = vmax.f32 %v1079, 0.0
        %v1218 = vmax.f32 %v1082, 0.0
        %v1219 = vmax.f32 %v1087, 0.0
        %v1220 = vmax.f32 %v1090, 0.0
        %v1221 = vmax.f32 %v1095, 0.0
        %v1222 = vmax.f32 %v1098, 0.0
        %v1223 = vmax.f32 %v1103, 0.0
        %v1224 = vmax.f32 %v1106, 0.0
        %v1225 = vmax.f32 %v1111, 0.0
        %v1226 = vmax.f32 %v1114, 0.0
        %v1227 = vmax.f32 %v1119, 0.0
        %v1228 = vmax.f32 %v1122, 0.0
        %v1229 = vmax.f32 %v1127, 0.0
        %v1230 = vmax.f32 %v1130, 0.0
        %v1231 = vmax.f32 %v1135, 0.0
        %v1232 = vmax.f32 %v1138, 0.0
        %v1233 = vmax.f32 %v1143, 0.0
        %v1234 = vmax.f32 %v1146, 0.0
        %v1235 = vmax.f32 %v1151, 0.0
        %v1236 = vmax.f32 %v1154, 0.0
        %v1237 = vmax.f32 %v1159, 0.0
        %v1238 = vmax.f32 %v1162, 0.0
        %v1239 = vmax.f32 %v1167, 0.0
        %v1240 = vmax.f32 %v1170, 0.0
        %v1241 = vmax.f32 %v1175, 0.0
        %v1242 = vmax.f32 %v1178, 0.0
        %v1243 = vmax.f32 %v1183, 0.0
        %v1244 = vmax.f32 %v1186, 0.0
        %v1245 = vmax.f32 %v1191, 0.0
        %v1246 = vmax.f32 %v1194, 0.0
        %v1247 = vmax.f32 %v1199, 0.0
        %v1248 = vmax.f32 %v1202, 0.0
        %v1249 = vmax.f32 %v1207, 0.0
        %v1250 = vmax.f32 %v1210, 0.0
        %v1251 = vld [vmem:[%s4] sm:$0xf]
        %v1252 = vld [vmem:[%s4 + $0x4] sm:$0xf]
        %v1253 = vld [vmem:[%s4 + $0x8] sm:$0xf]
        %v1254 = vld [vmem:[%s4 + $0xc] sm:$0xf]
        %v1255 = vld [vmem:[%s4 + $0x10] sm:$0xf]
        %v1256 = vld [vmem:[%s4 + $0x14] sm:$0xf]
        %v1257 = vld [vmem:[%s4 + $0x18] sm:$0xf]
        %v1258 = vld [vmem:[%s4 + $0x1c] sm:$0xf]
        %v1259 = vld [vmem:[%s4 + $0x20] sm:$0xf]
        %v1260 = vld [vmem:[%s4 + $0x24] sm:$0xf]
        %v1261 = vld [vmem:[%s4 + $0x28] sm:$0xf]
        %v1262 = vld [vmem:[%s4 + $0x2c] sm:$0xf]
        %v1263 = vld [vmem:[%s4 + $0x30] sm:$0xf]
        %v1264 = vld [vmem:[%s4 + $0x34] sm:$0xf]
        %v1265 = vld [vmem:[%s4 + $0x38] sm:$0xf]
        %v1266 = vld [vmem:[%s4 + $0x3c] sm:$0xf]
        %v1267 = vld [vmem:[%s5] sm:$0x1]
        %v1268 = vpack.c.bf16 %v1214, %v1213
        %v1269 = vpack.c.bf16 %v1216, %v1215
        %v1270 = vpack.c.bf16 %v1218, %v1217
        %v1271 = vpack.c.bf16 %v1220, %v1219
        %v1272 = vpack.c.bf16 %v1222, %v1221
        %v1273 = vpack.c.bf16 %v1224, %v1223
        %v1274 = vpack.c.bf16 %v1226, %v1225
        %v1275 = vpack.c.bf16 %v1228, %v1227
        %v1276 = vpack.c.bf16 %v1230, %v1229
        %v1277 = vpack.c.bf16 %v1232, %v1231
        %v1278 = vpack.c.bf16 %v1234, %v1233
        %v1279 = vpack.c.bf16 %v1236, %v1235
        %v1280 = vpack.c.bf16 %v1238, %v1237
        %v1281 = vpack.c.bf16 %v1240, %v1239
        %v1282 = vpack.c.bf16 %v1242, %v1241
        %v1283 = vpack.c.bf16 %v1244, %v1243
        %v1284 = vpack.c.bf16 %v1246, %v1245
        %v1285 = vpack.c.bf16 %v1248, %v1247
        %v1286 = vpack.c.bf16 %v1250, %v1249
        %v1288 = vlaneseq
        %v1289 = vshrl.u32 %v1288, 7
        %v1290 = vsub.s32 0, %v1289
        %v1291 = vrot.slane %v1267, %v1290
        %v1309 = vunpack.c.l.b16 %v1251
        %v1310 = vunpack.c.l.b16 %v1252
        %v1311 = vunpack.c.l.b16 %v1253
        %v1312 = vunpack.c.l.b16 %v1254
        %v1313 = vunpack.c.l.b16 %v1255
        %v1314 = vunpack.c.l.b16 %v1256
        %v1315 = vunpack.c.l.b16 %v1257
        %v1316 = vunpack.c.l.b16 %v1258
        %v1317 = vunpack.c.l.b16 %v1259
        %v1318 = vunpack.c.l.b16 %v1260
        %v1319 = vunpack.c.l.b16 %v1261
        %v1320 = vunpack.c.l.b16 %v1262
        %v1321 = vunpack.c.l.b16 %v1263
        %v1322 = vunpack.c.l.b16 %v1264
        %v1323 = vunpack.c.l.b16 %v1265
        %v1324 = vunpack.c.l.b16 %v1266
        %v1325 = vpack.c.b16 %v1310, %v1309
        %v1326 = vpack.c.b16 %v1312, %v1311
        %v1327 = vpack.c.b16 %v1314, %v1313
        %v1328 = vpack.c.b16 %v1316, %v1315
        %v1329 = vpack.c.b16 %v1318, %v1317
        %v1330 = vpack.c.b16 %v1320, %v1319
        %v1331 = vpack.c.b16 %v1322, %v1321
        %v1332 = vpack.c.b16 %v1324, %v1323
        %1341 = vmatprep.subr.bf16.mxu0 0
        %1342 = vmatpush1.bf16.msra.mxu0 %v1325
        %1343 = vmatprep.subr.bf16.mxu0 0
        %1344 = vmatpush1.bf16.msra.mxu0 %v1326
        %1345 = vmatprep.subr.bf16.mxu0 0
        %1346 = vmatpush1.bf16.msra.mxu0 %v1327
        %1347 = vmatprep.subr.bf16.mxu0 0
        %1348 = vmatpush1.bf16.msra.mxu0 %v1328
        %1349 = vmatprep.subr.bf16.mxu0 0
        %1350 = vmatpush1.bf16.msra.mxu0 %v1329
        %1351 = vmatprep.subr.bf16.mxu0 0
        %1352 = vmatpush1.bf16.msra.mxu0 %v1330
        %1353 = vmatprep.subr.bf16.mxu0 0
        %1354 = vmatpush1.bf16.msra.mxu0 %v1331
        %1355 = vmatprep.subr.bf16.mxu0 0
        %1356 = vmatpush1.bf16.msra.mxu0 %v1332
        %1357 = vmatprep.subr.bf16.mxu0 0
        %1358 = vmatpush1.bf16.msra.mxu0 0
        %1359 = vmatprep.subr.bf16.mxu0 0
        %1360 = vmatpush1.bf16.msra.mxu0 0
        %1361 = vmatprep.subr.bf16.mxu0 0
        %1362 = vmatpush1.bf16.msra.mxu0 0
        %1363 = vmatprep.subr.bf16.mxu0 0
        %1364 = vmatpush1.bf16.msra.mxu0 0
        %1365 = vmatprep.subr.bf16.mxu0 0
        %1366 = vmatpush1.bf16.msra.mxu0 0
        %1367 = vmatprep.subr.bf16.mxu0 0
        %1368 = vmatpush1.bf16.msra.mxu0 0
        %1369 = vmatprep.subr.bf16.mxu0 0
        %1370 = vmatpush1.bf16.msra.mxu0 0
        %1371 = vmatprep.subr.bf16.mxu0 0
        %1372 = vmatpush1.bf16.msra.mxu0 0
        %1373 = vmatprep.mubr.bf16.mxu0 0
        %1374 = vmatmul.mubr.bf16.gmra.mrb[0].mxu0 %v1268
        %v1375 = vpop.f32.mrb[0].mxu0
        %v1376 = vadd.f32 %v1291, %v1375
        %v1377 = vpop.f32.mrb[0].mxu0
        %v1378 = vpop.f32.mrb[0].mxu0
        %v1379 = vadd.f32 %v1291, %v1378
        %v1380 = vpop.f32.mrb[0].mxu0
        %1381 = vmatprep.mubr.bf16.mxu0 0
        %1382 = vmatmul.mubr.bf16.gmra.mrb[0].mxu0 %v1269
        %v1383 = vpop.f32.mrb[0].mxu0
        %v1384 = vadd.f32 %v1291, %v1383
        %v1385 = vpop.f32.mrb[0].mxu0
        %v1386 = vpop.f32.mrb[0].mxu0
        %v1387 = vadd.f32 %v1291, %v1386
        %v1388 = vpop.f32.mrb[0].mxu0
        %1389 = vmatprep.mubr.bf16.mxu0 0
        %1390 = vmatmul.mubr.bf16.gmra.mrb[0].mxu0 %v1270
        %v1391 = vpop.f32.mrb[0].mxu0
        %v1392 = vadd.f32 %v1291, %v1391
        %v1393 = vpop.f32.mrb[0].mxu0
        %v1394 = vpop.f32.mrb[0].mxu0
        %v1395 = vadd.f32 %v1291, %v1394
        %v1396 = vpop.f32.mrb[0].mxu0
        %1397 = vmatprep.mubr.bf16.mxu0 0
        %1398 = vmatmul.mubr.bf16.gmra.mrb[0].mxu0 %v1271
        %v1399 = vpop.f32.mrb[0].mxu0
        %v1400 = vadd.f32 %v1291, %v1399
        %v1401 = vpop.f32.mrb[0].mxu0
        %v1402 = vpop.f32.mrb[0].mxu0
        %v1403 = vadd.f32 %v1291, %v1402
        %v1404 = vpop.f32.mrb[0].mxu0
        %1405 = vmatprep.mubr.bf16.mxu0 0
        %1406 = vmatmul.mubr.bf16.gmra.mrb[0].mxu0 %v1272
        %v1407 = vpop.f32.mrb[0].mxu0
        %v1408 = vadd.f32 %v1291, %v1407
        %v1409 = vpop.f32.mrb[0].mxu0
        %v1410 = vpop.f32.mrb[0].mxu0
        %v1411 = vadd.f32 %v1291, %v1410
        %v1412 = vpop.f32.mrb[0].mxu0
        %1413 = vmatprep.mubr.bf16.mxu0 0
        %1414 = vmatmul.mubr.bf16.gmra.mrb[0].mxu0 %v1273
        %v1415 = vpop.f32.mrb[0].mxu0
        %v1416 = vadd.f32 %v1291, %v1415
        %v1417 = vpop.f32.mrb[0].mxu0
        %v1418 = vpop.f32.mrb[0].mxu0
        %v1419 = vadd.f32 %v1291, %v1418
        %v1420 = vpop.f32.mrb[0].mxu0
        %1421 = vmatprep.mubr.bf16.mxu0 0
        %1422 = vmatmul.mubr.bf16.gmra.mrb[0].mxu0 %v1274
        %v1423 = vpop.f32.mrb[0].mxu0
        %v1424 = vadd.f32 %v1291, %v1423
        %v1425 = vpop.f32.mrb[0].mxu0
        %v1426 = vpop.f32.mrb[0].mxu0
        %v1427 = vadd.f32 %v1291, %v1426
        %v1428 = vpop.f32.mrb[0].mxu0
        %1429 = vmatprep.mubr.bf16.mxu0 0
        %1430 = vmatmul.mubr.bf16.gmra.mrb[0].mxu0 %v1275
        %v1431 = vpop.f32.mrb[0].mxu0
        %v1432 = vadd.f32 %v1291, %v1431
        %v1433 = vpop.f32.mrb[0].mxu0
        %v1434 = vpop.f32.mrb[0].mxu0
        %v1435 = vadd.f32 %v1291, %v1434
        %v1436 = vpop.f32.mrb[0].mxu0
        %1437 = vmatprep.mubr.bf16.mxu0 0
        %1438 = vmatmul.mubr.bf16.gmra.mrb[0].mxu0 %v1276
        %v1439 = vpop.f32.mrb[0].mxu0
        %v1440 = vadd.f32 %v1291, %v1439
        %v1441 = vpop.f32.mrb[0].mxu0
        %v1442 = vpop.f32.mrb[0].mxu0
        %v1443 = vadd.f32 %v1291, %v1442
        %v1444 = vpop.f32.mrb[0].mxu0
        %1445 = vmatprep.mubr.bf16.mxu0 0
        %1446 = vmatmul.mubr.bf16.gmra.mrb[0].mxu0 %v1277
        %v1447 = vpop.f32.mrb[0].mxu0
        %v1448 = vadd.f32 %v1291, %v1447
        %v1449 = vpop.f32.mrb[0].mxu0
        %v1450 = vpop.f32.mrb[0].mxu0
        %v1451 = vadd.f32 %v1291, %v1450
        %v1452 = vpop.f32.mrb[0].mxu0
        %1453 = vmatprep.mubr.bf16.mxu0 0
        %1454 = vmatmul.mubr.bf16.gmra.mrb[0].mxu0 %v1278
        %v1455 = vpop.f32.mrb[0].mxu0
        %v1456 = vadd.f32 %v1291, %v1455
        %v1457 = vpop.f32.mrb[0].mxu0
        %v1458 = vpop.f32.mrb[0].mxu0
        %v1459 = vadd.f32 %v1291, %v1458
        %v1460 = vpop.f32.mrb[0].mxu0
        %1461 = vmatprep.mubr.bf16.mxu0 0
        %1462 = vmatmul.mubr.bf16.gmra.mrb[0].mxu0 %v1279
        %v1463 = vpop.f32.mrb[0].mxu0
        %v1464 = vadd.f32 %v1291, %v1463
        %v1465 = vpop.f32.mrb[0].mxu0
        %v1466 = vpop.f32.mrb[0].mxu0
        %v1467 = vadd.f32 %v1291, %v1466
        %v1468 = vpop.f32.mrb[0].mxu0
        %1469 = vmatprep.mubr.bf16.mxu0 0
        %1470 = vmatmul.mubr.bf16.gmra.mrb[0].mxu0 %v1280
        %v1471 = vpop.f32.mrb[0].mxu0
        %v1472 = vadd.f32 %v1291, %v1471
        %v1473 = vpop.f32.mrb[0].mxu0
        %v1474 = vpop.f32.mrb[0].mxu0
        %v1475 = vadd.f32 %v1291, %v1474
        %v1476 = vpop.f32.mrb[0].mxu0
        %1477 = vmatprep.mubr.bf16.mxu0 0
        %1478 = vmatmul.mubr.bf16.gmra.mrb[0].mxu0 %v1281
        %v1479 = vpop.f32.mrb[0].mxu0
        %v1480 = vadd.f32 %v1291, %v1479
        %v1481 = vpop.f32.mrb[0].mxu0
        %v1482 = vpop.f32.mrb[0].mxu0
        %v1483 = vadd.f32 %v1291, %v1482
        %v1484 = vpop.f32.mrb[0].mxu0
        %1485 = vmatprep.mubr.bf16.mxu0 0
        %1486 = vmatmul.mubr.bf16.gmra.mrb[0].mxu0 %v1282
        %v1487 = vpop.f32.mrb[0].mxu0
        %v1488 = vadd.f32 %v1291, %v1487
        %v1489 = vpop.f32.mrb[0].mxu0
        %v1490 = vpop.f32.mrb[0].mxu0
        %v1491 = vadd.f32 %v1291, %v1490
        %v1492 = vpop.f32.mrb[0].mxu0
        %1493 = vmatprep.mubr.bf16.mxu0 0
        %1494 = vmatmul.mubr.bf16.gmra.mrb[0].mxu0 %v1283
        %v1495 = vpop.f32.mrb[0].mxu0
        %v1496 = vadd.f32 %v1291, %v1495
        %v1497 = vpop.f32.mrb[0].mxu0
        %v1498 = vpop.f32.mrb[0].mxu0
        %v1499 = vadd.f32 %v1291, %v1498
        %v1500 = vpop.f32.mrb[0].mxu0
        %1501 = vmatprep.mubr.bf16.mxu0 0
        %1502 = vmatmul.mubr.bf16.gmra.mrb[0].mxu0 %v1284
        %v1503 = vpop.f32.mrb[0].mxu0
        %v1504 = vadd.f32 %v1291, %v1503
        %v1505 = vpop.f32.mrb[0].mxu0
        %v1506 = vpop.f32.mrb[0].mxu0
        %v1507 = vadd.f32 %v1291, %v1506
        %v1508 = vpop.f32.mrb[0].mxu0
        %1509 = vmatprep.mubr.bf16.mxu0 0
        %1510 = vmatmul.mubr.bf16.gmra.mrb[0].mxu0 %v1285
        %v1511 = vpop.f32.mrb[0].mxu0
        %v1512 = vadd.f32 %v1291, %v1511
        %v1513 = vpop.f32.mrb[0].mxu0
        %v1514 = vpop.f32.mrb[0].mxu0
        %v1515 = vadd.f32 %v1291, %v1514
        %v1516 = vpop.f32.mrb[0].mxu0
        %1517 = vmatprep.mubr.bf16.mxu0 0
        %1518 = vmatmul.mubr.bf16.gmra.mrb[0].mxu0 %v1286
        %v1519 = vpop.f32.mrb[0].mxu0
        %v1520 = vadd.f32 %v1291, %v1519
        %v1521 = vpop.f32.mrb[0].mxu0
        %v1522 = vpop.f32.mrb[0].mxu0
        %v1523 = vadd.f32 %v1291, %v1522
        %v1524 = vpop.f32.mrb[0].mxu0
        %1525 = vdwg.mxu0
        %v1526 = vmax.f32 %v1376, 0.0
        %v1527 = vmax.f32 %v1379, 0.0
        %v1528 = vmax.f32 %v1384, 0.0
        %v1529 = vmax.f32 %v1387, 0.0
        %v1530 = vmax.f32 %v1392, 0.0
        %v1531 = vmax.f32 %v1395, 0.0
        %v1532 = vmax.f32 %v1400, 0.0
        %v1533 = vmax.f32 %v1403, 0.0
        %v1534 = vmax.f32 %v1408, 0.0
        %v1535 = vmax.f32 %v1411, 0.0
        %v1536 = vmax.f32 %v1416, 0.0
        %v1537 = vmax.f32 %v1419, 0.0
        %v1538 = vmax.f32 %v1424, 0.0
        %v1539 = vmax.f32 %v1427, 0.0
        %v1540 = vmax.f32 %v1432, 0.0
        %v1541 = vmax.f32 %v1435, 0.0
        %v1542 = vmax.f32 %v1440, 0.0
        %v1543 = vmax.f32 %v1443, 0.0
        %v1544 = vmax.f32 %v1448, 0.0
        %v1545 = vmax.f32 %v1451, 0.0
        %v1546 = vmax.f32 %v1456, 0.0
        %v1547 = vmax.f32 %v1459, 0.0
        %v1548 = vmax.f32 %v1464, 0.0
        %v1549 = vmax.f32 %v1467, 0.0
        %v1550 = vmax.f32 %v1472, 0.0
        %v1551 = vmax.f32 %v1475, 0.0
        %v1552 = vmax.f32 %v1480, 0.0
        %v1553 = vmax.f32 %v1483, 0.0
        %v1554 = vmax.f32 %v1488, 0.0
        %v1555 = vmax.f32 %v1491, 0.0
        %v1556 = vmax.f32 %v1496, 0.0
        %v1557 = vmax.f32 %v1499, 0.0
        %v1558 = vmax.f32 %v1504, 0.0
        %v1559 = vmax.f32 %v1507, 0.0
        %v1560 = vmax.f32 %v1512, 0.0
        %v1561 = vmax.f32 %v1515, 0.0
        %v1562 = vmax.f32 %v1520, 0.0
        %v1563 = vmax.f32 %v1523, 0.0
        %v1564 = vld [vmem:[%s6] sm:$0xf]
        %v1565 = vld [vmem:[%s6 + $0x4] sm:$0xf]
        %v1566 = vld [vmem:[%s6 + $0x8] sm:$0xf]
        %v1567 = vld [vmem:[%s6 + $0xc] sm:$0xf]
        %v1568 = vld [vmem:[%s6 + $0x10] sm:$0xf]
        %v1569 = vld [vmem:[%s6 + $0x14] sm:$0xf]
        %v1570 = vld [vmem:[%s6 + $0x18] sm:$0xf]
        %v1571 = vld [vmem:[%s6 + $0x1c] sm:$0xf]
        %v1572 = vld [vmem:[%s6 + $0x20] sm:$0xf]
        %v1573 = vld [vmem:[%s6 + $0x24] sm:$0xf]
        %v1574 = vld [vmem:[%s6 + $0x28] sm:$0xf]
        %v1575 = vld [vmem:[%s6 + $0x2c] sm:$0xf]
        %v1576 = vld [vmem:[%s6 + $0x30] sm:$0xf]
        %v1577 = vld [vmem:[%s6 + $0x34] sm:$0xf]
        %v1578 = vld [vmem:[%s6 + $0x38] sm:$0xf]
        %v1579 = vld [vmem:[%s6 + $0x3c] sm:$0xf]
        %v1580 = vld [vmem:[%s7] sm:$0x1]
        %v1581 = vpack.c.bf16 %v1527, %v1526
        %v1582 = vpack.c.bf16 %v1529, %v1528
        %v1583 = vpack.c.bf16 %v1531, %v1530
        %v1584 = vpack.c.bf16 %v1533, %v1532
        %v1585 = vpack.c.bf16 %v1535, %v1534
        %v1586 = vpack.c.bf16 %v1537, %v1536
        %v1587 = vpack.c.bf16 %v1539, %v1538
        %v1588 = vpack.c.bf16 %v1541, %v1540
        %v1589 = vpack.c.bf16 %v1543, %v1542
        %v1590 = vpack.c.bf16 %v1545, %v1544
        %v1591 = vpack.c.bf16 %v1547, %v1546
        %v1592 = vpack.c.bf16 %v1549, %v1548
        %v1593 = vpack.c.bf16 %v1551, %v1550
        %v1594 = vpack.c.bf16 %v1553, %v1552
        %v1595 = vpack.c.bf16 %v1555, %v1554
        %v1596 = vpack.c.bf16 %v1557, %v1556
        %v1597 = vpack.c.bf16 %v1559, %v1558
        %v1598 = vpack.c.bf16 %v1561, %v1560
        %v1599 = vpack.c.bf16 %v1563, %v1562
        %v1601 = vlaneseq
        %v1602 = vshrl.u32 %v1601, 7
        %v1603 = vsub.s32 0, %v1602
        %v1604 = vrot.slane %v1580, %v1603
        %v1622 = vunpack.c.l.b16 %v1564
        %v1623 = vunpack.c.l.b16 %v1565
        %v1624 = vunpack.c.l.b16 %v1566
        %v1625 = vunpack.c.l.b16 %v1567
        %v1626 = vunpack.c.l.b16 %v1568
        %v1627 = vunpack.c.l.b16 %v1569
        %v1628 = vunpack.c.l.b16 %v1570
        %v1629 = vunpack.c.l.b16 %v1571
        %v1630 = vunpack.c.l.b16 %v1572
        %v1631 = vunpack.c.l.b16 %v1573
        %v1632 = vunpack.c.l.b16 %v1574
        %v1633 = vunpack.c.l.b16 %v1575
        %v1634 = vunpack.c.l.b16 %v1576
        %v1635 = vunpack.c.l.b16 %v1577
        %v1636 = vunpack.c.l.b16 %v1578
        %v1637 = vunpack.c.l.b16 %v1579
        %v1638 = vpack.c.b16 %v1623, %v1622
        %v1639 = vpack.c.b16 %v1625, %v1624
        %v1640 = vpack.c.b16 %v1627, %v1626
        %v1641 = vpack.c.b16 %v1629, %v1628
        %v1642 = vpack.c.b16 %v1631, %v1630
        %v1643 = vpack.c.b16 %v1633, %v1632
        %v1644 = vpack.c.b16 %v1635, %v1634
        %v1645 = vpack.c.b16 %v1637, %v1636
        %1654 = vmatprep.subr.bf16.mxu0 0
        %1655 = vmatpush1.bf16.msra.mxu0 %v1638
        %1656 = vmatprep.subr.bf16.mxu0 0
        %1657 = vmatpush1.bf16.msra.mxu0 %v1639
        %1658 = vmatprep.subr.bf16.mxu0 0
        %1659 = vmatpush1.bf16.msra.mxu0 %v1640
        %1660 = vmatprep.subr.bf16.mxu0 0
        %1661 = vmatpush1.bf16.msra.mxu0 %v1641
        %1662 = vmatprep.subr.bf16.mxu0 0
        %1663 = vmatpush1.bf16.msra.mxu0 %v1642
        %1664 = vmatprep.subr.bf16.mxu0 0
        %1665 = vmatpush1.bf16.msra.mxu0 %v1643
        %1666 = vmatprep.subr.bf16.mxu0 0
        %1667 = vmatpush1.bf16.msra.mxu0 %v1644
        %1668 = vmatprep.subr.bf16.mxu0 0
        %1669 = vmatpush1.bf16.msra.mxu0 %v1645
        %1670 = vmatprep.subr.bf16.mxu0 0
        %1671 = vmatpush1.bf16.msra.mxu0 0
        %1672 = vmatprep.subr.bf16.mxu0 0
        %1673 = vmatpush1.bf16.msra.mxu0 0
        %1674 = vmatprep.subr.bf16.mxu0 0
        %1675 = vmatpush1.bf16.msra.mxu0 0
        %1676 = vmatprep.subr.bf16.mxu0 0
        %1677 = vmatpush1.bf16.msra.mxu0 0
        %1678 = vmatprep.subr.bf16.mxu0 0
        %1679 = vmatpush1.bf16.msra.mxu0 0
        %1680 = vmatprep.subr.bf16.mxu0 0
        %1681 = vmatpush1.bf16.msra.mxu0 0
        %1682 = vmatprep.subr.bf16.mxu0 0
        %1683 = vmatpush1.bf16.msra.mxu0 0
        %1684 = vmatprep.subr.bf16.mxu0 0
        %1685 = vmatpush1.bf16.msra.mxu0 0
        %1686 = vmatprep.mubr.bf16.mxu0 0
        %1687 = vmatmul.mubr.bf16.gmra.mrb[0].mxu0 %v1581
        %v1688 = vpop.f32.mrb[0].mxu0
        %v1689 = vadd.f32 %v1604, %v1688
        %v1690 = vpop.f32.mrb[0].mxu0
        %v1691 = vpop.f32.mrb[0].mxu0
        %v1692 = vadd.f32 %v1604, %v1691
        %v1693 = vpop.f32.mrb[0].mxu0
        %1694 = vmatprep.mubr.bf16.mxu0 0
        %1695 = vmatmul.mubr.bf16.gmra.mrb[0].mxu0 %v1582
        %v1696 = vpop.f32.mrb[0].mxu0
        %v1697 = vadd.f32 %v1604, %v1696
        %v1698 = vpop.f32.mrb[0].mxu0
        %v1699 = vpop.f32.mrb[0].mxu0
        %v1700 = vadd.f32 %v1604, %v1699
        %v1701 = vpop.f32.mrb[0].mxu0
        %1702 = vmatprep.mubr.bf16.mxu0 0
        %1703 = vmatmul.mubr.bf16.gmra.mrb[0].mxu0 %v1583
        %v1704 = vpop.f32.mrb[0].mxu0
        %v1705 = vadd.f32 %v1604, %v1704
        %v1706 = vpop.f32.mrb[0].mxu0
        %v1707 = vpop.f32.mrb[0].mxu0
        %v1708 = vadd.f32 %v1604, %v1707
        %v1709 = vpop.f32.mrb[0].mxu0
        %1710 = vmatprep.mubr.bf16.mxu0 0
        %1711 = vmatmul.mubr.bf16.gmra.mrb[0].mxu0 %v1584
        %v1712 = vpop.f32.mrb[0].mxu0
        %v1713 = vadd.f32 %v1604, %v1712
        %v1714 = vpop.f32.mrb[0].mxu0
        %v1715 = vpop.f32.mrb[0].mxu0
        %v1716 = vadd.f32 %v1604, %v1715
        %v1717 = vpop.f32.mrb[0].mxu0
        %1718 = vmatprep.mubr.bf16.mxu0 0
        %1719 = vmatmul.mubr.bf16.gmra.mrb[0].mxu0 %v1585
        %v1720 = vpop.f32.mrb[0].mxu0
        %v1721 = vadd.f32 %v1604, %v1720
        %v1722 = vpop.f32.mrb[0].mxu0
        %v1723 = vpop.f32.mrb[0].mxu0
        %v1724 = vadd.f32 %v1604, %v1723
        %v1725 = vpop.f32.mrb[0].mxu0
        %1726 = vmatprep.mubr.bf16.mxu0 0
        %1727 = vmatmul.mubr.bf16.gmra.mrb[0].mxu0 %v1586
        %v1728 = vpop.f32.mrb[0].mxu0
        %v1729 = vadd.f32 %v1604, %v1728
        %v1730 = vpop.f32.mrb[0].mxu0
        %v1731 = vpop.f32.mrb[0].mxu0
        %v1732 = vadd.f32 %v1604, %v1731
        %v1733 = vpop.f32.mrb[0].mxu0
        %1734 = vmatprep.mubr.bf16.mxu0 0
        %1735 = vmatmul.mubr.bf16.gmra.mrb[0].mxu0 %v1587
        %v1736 = vpop.f32.mrb[0].mxu0
        %v1737 = vadd.f32 %v1604, %v1736
        %v1738 = vpop.f32.mrb[0].mxu0
        %v1739 = vpop.f32.mrb[0].mxu0
        %v1740 = vadd.f32 %v1604, %v1739
        %v1741 = vpop.f32.mrb[0].mxu0
        %1742 = vmatprep.mubr.bf16.mxu0 0
        %1743 = vmatmul.mubr.bf16.gmra.mrb[0].mxu0 %v1588
        %v1744 = vpop.f32.mrb[0].mxu0
        %v1745 = vadd.f32 %v1604, %v1744
        %v1746 = vpop.f32.mrb[0].mxu0
        %v1747 = vpop.f32.mrb[0].mxu0
        %v1748 = vadd.f32 %v1604, %v1747
        %v1749 = vpop.f32.mrb[0].mxu0
        %1750 = vmatprep.mubr.bf16.mxu0 0
        %1751 = vmatmul.mubr.bf16.gmra.mrb[0].mxu0 %v1589
        %v1752 = vpop.f32.mrb[0].mxu0
        %v1753 = vadd.f32 %v1604, %v1752
        %v1754 = vpop.f32.mrb[0].mxu0
        %v1755 = vpop.f32.mrb[0].mxu0
        %v1756 = vadd.f32 %v1604, %v1755
        %v1757 = vpop.f32.mrb[0].mxu0
        %1758 = vmatprep.mubr.bf16.mxu0 0
        %1759 = vmatmul.mubr.bf16.gmra.mrb[0].mxu0 %v1590
        %v1760 = vpop.f32.mrb[0].mxu0
        %v1761 = vadd.f32 %v1604, %v1760
        %v1762 = vpop.f32.mrb[0].mxu0
        %v1763 = vpop.f32.mrb[0].mxu0
        %v1764 = vadd.f32 %v1604, %v1763
        %v1765 = vpop.f32.mrb[0].mxu0
        %1766 = vmatprep.mubr.bf16.mxu0 0
        %1767 = vmatmul.mubr.bf16.gmra.mrb[0].mxu0 %v1591
        %v1768 = vpop.f32.mrb[0].mxu0
        %v1769 = vadd.f32 %v1604, %v1768
        %v1770 = vpop.f32.mrb[0].mxu0
        %v1771 = vpop.f32.mrb[0].mxu0
        %v1772 = vadd.f32 %v1604, %v1771
        %v1773 = vpop.f32.mrb[0].mxu0
        %1774 = vmatprep.mubr.bf16.mxu0 0
        %1775 = vmatmul.mubr.bf16.gmra.mrb[0].mxu0 %v1592
        %v1776 = vpop.f32.mrb[0].mxu0
        %v1777 = vadd.f32 %v1604, %v1776
        %v1778 = vpop.f32.mrb[0].mxu0
        %v1779 = vpop.f32.mrb[0].mxu0
        %v1780 = vadd.f32 %v1604, %v1779
        %v1781 = vpop.f32.mrb[0].mxu0
        %1782 = vmatprep.mubr.bf16.mxu0 0
        %1783 = vmatmul.mubr.bf16.gmra.mrb[0].mxu0 %v1593
        %v1784 = vpop.f32.mrb[0].mxu0
        %v1785 = vadd.f32 %v1604, %v1784
        %v1786 = vpop.f32.mrb[0].mxu0
        %v1787 = vpop.f32.mrb[0].mxu0
        %v1788 = vadd.f32 %v1604, %v1787
        %v1789 = vpop.f32.mrb[0].mxu0
        %1790 = vmatprep.mubr.bf16.mxu0 0
        %1791 = vmatmul.mubr.bf16.gmra.mrb[0].mxu0 %v1594
        %v1792 = vpop.f32.mrb[0].mxu0
        %v1793 = vadd.f32 %v1604, %v1792
        %v1794 = vpop.f32.mrb[0].mxu0
        %v1795 = vpop.f32.mrb[0].mxu0
        %v1796 = vadd.f32 %v1604, %v1795
        %v1797 = vpop.f32.mrb[0].mxu0
        %1798 = vmatprep.mubr.bf16.mxu0 0
        %1799 = vmatmul.mubr.bf16.gmra.mrb[0].mxu0 %v1595
        %v1800 = vpop.f32.mrb[0].mxu0
        %v1801 = vadd.f32 %v1604, %v1800
        %v1802 = vpop.f32.mrb[0].mxu0
        %v1803 = vpop.f32.mrb[0].mxu0
        %v1804 = vadd.f32 %v1604, %v1803
        %v1805 = vpop.f32.mrb[0].mxu0
        %1806 = vmatprep.mubr.bf16.mxu0 0
        %1807 = vmatmul.mubr.bf16.gmra.mrb[0].mxu0 %v1596
        %v1808 = vpop.f32.mrb[0].mxu0
        %v1809 = vadd.f32 %v1604, %v1808
        %v1810 = vpop.f32.mrb[0].mxu0
        %v1811 = vpop.f32.mrb[0].mxu0
        %v1812 = vadd.f32 %v1604, %v1811
        %v1813 = vpop.f32.mrb[0].mxu0
        %1814 = vmatprep.mubr.bf16.mxu0 0
        %1815 = vmatmul.mubr.bf16.gmra.mrb[0].mxu0 %v1597
        %v1816 = vpop.f32.mrb[0].mxu0
        %v1817 = vadd.f32 %v1604, %v1816
        %v1818 = vpop.f32.mrb[0].mxu0
        %v1819 = vpop.f32.mrb[0].mxu0
        %v1820 = vadd.f32 %v1604, %v1819
        %v1821 = vpop.f32.mrb[0].mxu0
        %1822 = vmatprep.mubr.bf16.mxu0 0
        %1823 = vmatmul.mubr.bf16.gmra.mrb[0].mxu0 %v1598
        %v1824 = vpop.f32.mrb[0].mxu0
        %v1825 = vadd.f32 %v1604, %v1824
        %v1826 = vpop.f32.mrb[0].mxu0
        %v1827 = vpop.f32.mrb[0].mxu0
        %v1828 = vadd.f32 %v1604, %v1827
        %v1829 = vpop.f32.mrb[0].mxu0
        %1830 = vmatprep.mubr.bf16.mxu0 0
        %1831 = vmatmul.mubr.bf16.gmra.mrb[0].mxu0 %v1599
        %v1832 = vpop.f32.mrb[0].mxu0
        %v1833 = vadd.f32 %v1604, %v1832
        %v1834 = vpop.f32.mrb[0].mxu0
        %v1835 = vpop.f32.mrb[0].mxu0
        %v1836 = vadd.f32 %v1604, %v1835
        %v1837 = vpop.f32.mrb[0].mxu0
        %1838 = vdwg.mxu0
        %v1839 = vmax.f32 %v1689, 0.0
        %v1840 = vmax.f32 %v1692, 0.0
        %v1841 = vmax.f32 %v1697, 0.0
        %v1842 = vmax.f32 %v1700, 0.0
        %v1843 = vmax.f32 %v1705, 0.0
        %v1844 = vmax.f32 %v1708, 0.0
        %v1845 = vmax.f32 %v1713, 0.0
        %v1846 = vmax.f32 %v1716, 0.0
        %v1847 = vmax.f32 %v1721, 0.0
        %v1848 = vmax.f32 %v1724, 0.0
        %v1849 = vmax.f32 %v1729, 0.0
        %v1850 = vmax.f32 %v1732, 0.0
        %v1851 = vmax.f32 %v1737, 0.0
        %v1852 = vmax.f32 %v1740, 0.0
        %v1853 = vmax.f32 %v1745, 0.0
        %v1854 = vmax.f32 %v1748, 0.0
        %v1855 = vmax.f32 %v1753, 0.0
        %v1856 = vmax.f32 %v1756, 0.0
        %v1857 = vmax.f32 %v1761, 0.0
        %v1858 = vmax.f32 %v1764, 0.0
        %v1859 = vmax.f32 %v1769, 0.0
        %v1860 = vmax.f32 %v1772, 0.0
        %v1861 = vmax.f32 %v1777, 0.0
        %v1862 = vmax.f32 %v1780, 0.0
        %v1863 = vmax.f32 %v1785, 0.0
        %v1864 = vmax.f32 %v1788, 0.0
        %v1865 = vmax.f32 %v1793, 0.0
        %v1866 = vmax.f32 %v1796, 0.0
        %v1867 = vmax.f32 %v1801, 0.0
        %v1868 = vmax.f32 %v1804, 0.0
        %v1869 = vmax.f32 %v1809, 0.0
        %v1870 = vmax.f32 %v1812, 0.0
        %v1871 = vmax.f32 %v1817, 0.0
        %v1872 = vmax.f32 %v1820, 0.0
        %v1873 = vmax.f32 %v1825, 0.0
        %v1874 = vmax.f32 %v1828, 0.0
        %v1875 = vmax.f32 %v1833, 0.0
        %v1876 = vmax.f32 %v1836, 0.0
        %1877 = vst.msk [vmem:[%s335] sm:$0xff] %vm717, %v1839
        %1878 = vst.msk [vmem:[%s335 + $0x8] sm:$0xff] %vm717, %v1840
        %1879 = vst.msk [vmem:[%s335 + $0x10] sm:$0xff] %vm717, %v1841
        %1880 = vst.msk [vmem:[%s335 + $0x18] sm:$0xff] %vm717, %v1842
        %1881 = vst.msk [vmem:[%s335 + $0x20] sm:$0xff] %vm717, %v1843
        %1882 = vst.msk [vmem:[%s335 + $0x28] sm:$0xff] %vm717, %v1844
        %1883 = vst.msk [vmem:[%s335 + $0x30] sm:$0xff] %vm717, %v1845
        %1884 = vst.msk [vmem:[%s335 + $0x38] sm:$0xff] %vm717, %v1846
        %1885 = vst.msk [vmem:[%s335 + $0x40] sm:$0xff] %vm717, %v1847
        %1886 = vst.msk [vmem:[%s335 + $0x48] sm:$0xff] %vm717, %v1848
        %1887 = vst.msk [vmem:[%s335 + $0x50] sm:$0xff] %vm717, %v1849
        %1888 = vst.msk [vmem:[%s335 + $0x58] sm:$0xff] %vm717, %v1850
        %1889 = vst.msk [vmem:[%s335 + $0x60] sm:$0xff] %vm717, %v1851
        %1890 = vst.msk [vmem:[%s335 + $0x68] sm:$0xff] %vm717, %v1852
        %1891 = vst.msk [vmem:[%s335 + $0x70] sm:$0xff] %vm717, %v1853
        %1892 = vst.msk [vmem:[%s335 + $0x78] sm:$0xff] %vm717, %v1854
        %1893 = vst.msk [vmem:[%s335 + $0x80] sm:$0xff] %vm717, %v1855
        %1894 = vst.msk [vmem:[%s335 + $0x88] sm:$0xff] %vm717, %v1856
        %1895 = vst.msk [vmem:[%s335 + $0x90] sm:$0xff] %vm717, %v1857
        %1896 = vst.msk [vmem:[%s335 + $0x98] sm:$0xff] %vm717, %v1858
        %1897 = vst.msk [vmem:[%s335 + $0xa0] sm:$0xff] %vm717, %v1859
        %1898 = vst.msk [vmem:[%s335 + $0xa8] sm:$0xff] %vm717, %v1860
        %1899 = vst.msk [vmem:[%s335 + $0xb0] sm:$0xff] %vm717, %v1861
        %1900 = vst.msk [vmem:[%s335 + $0xb8] sm:$0xff] %vm717, %v1862
        %1901 = vst.msk [vmem:[%s335 + $0xc0] sm:$0xff] %vm717, %v1863
        %1902 = vst.msk [vmem:[%s335 + $0xc8] sm:$0xff] %vm717, %v1864
        %1903 = vst.msk [vmem:[%s335 + $0xd0] sm:$0xff] %vm717, %v1865
        %1904 = vst.msk [vmem:[%s335 + $0xd8] sm:$0xff] %vm717, %v1866
        %1905 = vst.msk [vmem:[%s335 + $0xe0] sm:$0xff] %vm717, %v1867
        %1906 = vst.msk [vmem:[%s335 + $0xe8] sm:$0xff] %vm717, %v1868
        %1907 = vst.msk [vmem:[%s335 + $0xf0] sm:$0xff] %vm717, %v1869
        %1908 = vst.msk [vmem:[%s335 + $0xf8] sm:$0xff] %vm717, %v1870
        %1909 = vst.msk [vmem:[%s335 + $0x100] sm:$0xff] %vm717, %v1871
        %1910 = vst.msk [vmem:[%s335 + $0x108] sm:$0xff] %vm717, %v1872
        %1911 = vst.msk [vmem:[%s335 + $0x110] sm:$0xff] %vm717, %v1873
        %1912 = vst.msk [vmem:[%s335 + $0x118] sm:$0xff] %vm717, %v1874
        %1913 = vst.msk [vmem:[%s335 + $0x120] sm:$0xff] %vm717, %v1875
        %1914 = vst.msk [vmem:[%s335 + $0x128] sm:$0xff] %vm717, %v1876
        %s1915 = sand.u32 %s205, 1
        %s1916 = sand.u32 %s205, 1
        %s1917 = smul.addr %s1916, 304
        %s1918 = scalar_lea.vmem [#allocation2], %s1917
        // Predicated region
        $region53: #{encoder_forward.1} parent=51 // pred_check
          %p1919 = pneg %p215
        $region54: #{encoder_forward.1} parent=51 // pred_check_branch
          %1921 = sbr.rel (%p1919) target = $region56
        $region55: #{encoder_forward.1} parent=51 // pred_region
          %s1922 = smul.u32 38, %s19
          %s1923 = ssub.s32 75, %s1922
          %p1924 = scmp.lt.s32.totalorder %s1923, 38
          %s1925 = scalar_select %p1924, %s1923, 38
          %s1926 = smul.u32 128, %s1925
          %p1927 = scmp.ne.s32.totalorder 0, %s1926
          %s1928 = smul.addr %s1922, 8
          %s1929 = scalar_lea.vmem %s8, %s1928
          // Predicated region
          $region57: #{encoder_forward.1} parent=55 // pred_check
            %p1930 = pneg %p1927
          $region58: #{encoder_forward.1} parent=55 // pred_check_branch
            %1932 = sbr.rel (%p1930) target = $region60
          $region59: #{encoder_forward.1} parent=55 // pred_region
            // Predicated region
            $region61: #{encoder_forward.1} parent=59 // pred_check
              _
            $region62: #{encoder_forward.1} parent=59 // pred_check_branch
              %1934 = sbr.rel (0) target = $region64
            $region63: #{encoder_forward.1} parent=59 // pred_region
              // Predicated region
              $region83: #{encoder_forward.1} parent=63 // pred_check
                _
              $region84: #{encoder_forward.1} parent=63 // pred_check_branch
                %2058 = sbr.rel (0) target = $region86
              $region85: #{encoder_forward.1} parent=63 // pred_region
                %s2059 = sdiv.u32.pop %s1925, 38
                %s2060 = srem.u32.pop %s1925, 38
                // While loop
                $region87: #{encoder_forward.1} parent=85 // loop_pre_header
                  _
                $region88: #{encoder_forward.1} parent=85 // loop_header
                  %s2062 = sphi 0, %s2064
                  %p2063 = scmp.ge.s32.totalorder %s2062, %s2059
                  %s2067 = sphi 0, %s2148
                  %s2068 = sphi %s1918, %s2151
                  %s2069 = sphi %s1929, %s2152
                $region89: #{encoder_forward.1} parent=85 // loop_header_branch
                  %2066 = sbr.rel (%p2063) target = $region93
                $region90: #{encoder_forward.1} parent=85 // loop_body
                  %v2070 = vld [vmem:[%s2068] sm:$0xff]
                  %2071 = vst [vmem:[%s2069] sm:$0xff] %v2070
                  %v2072 = vld [vmem:[%s2068 + $0x8] sm:$0xff]
                  %2073 = vst [vmem:[%s2069 + $0x8] sm:$0xff] %v2072
                  %v2074 = vld [vmem:[%s2068 + $0x10] sm:$0xff]
                  %2075 = vst [vmem:[%s2069 + $0x10] sm:$0xff] %v2074
                  %v2076 = vld [vmem:[%s2068 + $0x18] sm:$0xff]
                  %2077 = vst [vmem:[%s2069 + $0x18] sm:$0xff] %v2076
                  %v2078 = vld [vmem:[%s2068 + $0x20] sm:$0xff]
                  %2079 = vst [vmem:[%s2069 + $0x20] sm:$0xff] %v2078
                  %v2080 = vld [vmem:[%s2068 + $0x28] sm:$0xff]
                  %2081 = vst [vmem:[%s2069 + $0x28] sm:$0xff] %v2080
                  %v2082 = vld [vmem:[%s2068 + $0x30] sm:$0xff]
                  %2083 = vst [vmem:[%s2069 + $0x30] sm:$0xff] %v2082
                  %v2084 = vld [vmem:[%s2068 + $0x38] sm:$0xff]
                  %2085 = vst [vmem:[%s2069 + $0x38] sm:$0xff] %v2084
                  %v2086 = vld [vmem:[%s2068 + $0x40] sm:$0xff]
                  %2087 = vst [vmem:[%s2069 + $0x40] sm:$0xff] %v2086
                  %v2088 = vld [vmem:[%s2068 + $0x48] sm:$0xff]
                  %2089 = vst [vmem:[%s2069 + $0x48] sm:$0xff] %v2088
                  %v2090 = vld [vmem:[%s2068 + $0x50] sm:$0xff]
                  %2091 = vst [vmem:[%s2069 + $0x50] sm:$0xff] %v2090
                  %v2092 = vld [vmem:[%s2068 + $0x58] sm:$0xff]
                  %2093 = vst [vmem:[%s2069 + $0x58] sm:$0xff] %v2092
                  %v2094 = vld [vmem:[%s2068 + $0x60] sm:$0xff]
                  %2095 = vst [vmem:[%s2069 + $0x60] sm:$0xff] %v2094
                  %v2096 = vld [vmem:[%s2068 + $0x68] sm:$0xff]
                  %2097 = vst [vmem:[%s2069 + $0x68] sm:$0xff] %v2096
                  %v2098 = vld [vmem:[%s2068 + $0x70] sm:$0xff]
                  %2099 = vst [vmem:[%s2069 + $0x70] sm:$0xff] %v2098
                  %v2100 = vld [vmem:[%s2068 + $0x78] sm:$0xff]
                  %2101 = vst [vmem:[%s2069 + $0x78] sm:$0xff] %v2100
                  %v2102 = vld [vmem:[%s2068 + $0x80] sm:$0xff]
                  %2103 = vst [vmem:[%s2069 + $0x80] sm:$0xff] %v2102
                  %v2104 = vld [vmem:[%s2068 + $0x88] sm:$0xff]
                  %2105 = vst [vmem:[%s2069 + $0x88] sm:$0xff] %v2104
                  %v2106 = vld [vmem:[%s2068 + $0x90] sm:$0xff]
                  %2107 = vst [vmem:[%s2069 + $0x90] sm:$0xff] %v2106
                  %v2108 = vld [vmem:[%s2068 + $0x98] sm:$0xff]
                  %2109 = vst [vmem:[%s2069 + $0x98] sm:$0xff] %v2108
                  %v2110 = vld [vmem:[%s2068 + $0xa0] sm:$0xff]
                  %2111 = vst [vmem:[%s2069 + $0xa0] sm:$0xff] %v2110
                  %v2112 = vld [vmem:[%s2068 + $0xa8] sm:$0xff]
                  %2113 = vst [vmem:[%s2069 + $0xa8] sm:$0xff] %v2112
                  %v2114 = vld [vmem:[%s2068 + $0xb0] sm:$0xff]
                  %2115 = vst [vmem:[%s2069 + $0xb0] sm:$0xff] %v2114
                  %v2116 = vld [vmem:[%s2068 + $0xb8] sm:$0xff]
                  %2117 = vst [vmem:[%s2069 + $0xb8] sm:$0xff] %v2116
                  %v2118 = vld [vmem:[%s2068 + $0xc0] sm:$0xff]
                  %2119 = vst [vmem:[%s2069 + $0xc0] sm:$0xff] %v2118
                  %v2120 = vld [vmem:[%s2068 + $0xc8] sm:$0xff]
                  %2121 = vst [vmem:[%s2069 + $0xc8] sm:$0xff] %v2120
                  %v2122 = vld [vmem:[%s2068 + $0xd0] sm:$0xff]
                  %2123 = vst [vmem:[%s2069 + $0xd0] sm:$0xff] %v2122
                  %v2124 = vld [vmem:[%s2068 + $0xd8] sm:$0xff]
                  %2125 = vst [vmem:[%s2069 + $0xd8] sm:$0xff] %v2124
                  %v2126 = vld [vmem:[%s2068 + $0xe0] sm:$0xff]
                  %2127 = vst [vmem:[%s2069 + $0xe0] sm:$0xff] %v2126
                  %v2128 = vld [vmem:[%s2068 + $0xe8] sm:$0xff]
                  %2129 = vst [vmem:[%s2069 + $0xe8] sm:$0xff] %v2128
                  %v2130 = vld [vmem:[%s2068 + $0xf0] sm:$0xff]
                  %2131 = vst [vmem:[%s2069 + $0xf0] sm:$0xff] %v2130
                  %v2132 = vld [vmem:[%s2068 + $0xf8] sm:$0xff]
                  %2133 = vst [vmem:[%s2069 + $0xf8] sm:$0xff] %v2132
                  %v2134 = vld [vmem:[%s2068 + $0x100] sm:$0xff]
                  %2135 = vst [vmem:[%s2069 + $0x100] sm:$0xff] %v2134
                  %v2136 = vld [vmem:[%s2068 + $0x108] sm:$0xff]
                  %2137 = vst [vmem:[%s2069 + $0x108] sm:$0xff] %v2136
                  %v2138 = vld [vmem:[%s2068 + $0x110] sm:$0xff]
                  %2139 = vst [vmem:[%s2069 + $0x110] sm:$0xff] %v2138
                  %v2140 = vld [vmem:[%s2068 + $0x118] sm:$0xff]
                  %2141 = vst [vmem:[%s2069 + $0x118] sm:$0xff] %v2140
                  %v2142 = vld [vmem:[%s2068 + $0x120] sm:$0xff]
                  %2143 = vst [vmem:[%s2069 + $0x120] sm:$0xff] %v2142
                  %v2144 = vld [vmem:[%s2068 + $0x128] sm:$0xff]
                  %2145 = vst [vmem:[%s2069 + $0x128] sm:$0xff] %v2144
                  %s2146 = sadd.s32 1, %s2067
                  %p2147 = scmp.ge.s32.totalorder %s2146, %s2059
                  %s2148 = scalar_select %p2147, 0, %s2146
                  %s2149 = smul.u32 %s2148, 304
                  %s2150 = smul.u32 %s2148, 304
                  %s2151 = scalar_lea.vmem %s1918, %s2149 [#allocation2]
                  %s2152 = scalar_lea.vmem %s1929, %s2150
                $region91: #{encoder_forward.1} parent=85 // loop_footer
                  %s2064 = sadd.s32 %s2062, 1
                $region92: #{encoder_forward.1} parent=85 // loop_footer_branch
                  %2061 = sbr.rel target = $region88
                $region93: #{encoder_forward.1} parent=85 // loop_exit
                  _
                %s2153 = sdiv.u32.pop %s1925, 38
                %s2154 = srem.u32.pop %s1925, 38
                %s2155 = smul.u32 %s2153, 38
                %s2156 = smul.u32 8, %s2155
                %s2157 = scalar_lea.vmem %s1918, %s2156 [#allocation2]
                %s2158 = smul.u32 8, %s2155
                %s2159 = scalar_lea.vmem %s1929, %s2158
                // While loop
                $region94: #{encoder_forward.1} parent=85 // loop_pre_header
                  _
                $region95: #{encoder_forward.1} parent=85 // loop_header
                  %s2161 = sphi 0, %s2163
                  %p2162 = scmp.ge.s32.totalorder %s2161, %s2154
                  %s2166 = sphi 0, %s2173
                  %s2167 = sphi %s2157, %s2176
                  %s2168 = sphi %s2159, %s2177
                $region96: #{encoder_forward.1} parent=85 // loop_header_branch
                  %2165 = sbr.rel (%p2162) target = $region100
                $region97: #{encoder_forward.1} parent=85 // loop_body
                  %v2169 = vld [vmem:[%s2167] sm:$0xff]
                  %2170 = vst [vmem:[%s2168] sm:$0xff] %v2169
                  %s2171 = sadd.s32 1, %s2166
                  %p2172 = scmp.ge.s32.totalorder %s2171, %s2154
                  %s2173 = scalar_select %p2172, 0, %s2171
                  %s2174 = smul.u32 %s2173, 8
                  %s2175 = smul.u32 %s2173, 8
                  %s2176 = scalar_lea.vmem %s2157, %s2174 [#allocation2]
                  %s2177 = scalar_lea.vmem %s2159, %s2175
                $region98: #{encoder_forward.1} parent=85 // loop_footer
                  %s2163 = sadd.s32 %s2161, 1
                $region99: #{encoder_forward.1} parent=85 // loop_footer_branch
                  %2160 = sbr.rel target = $region95
                $region100: #{encoder_forward.1} parent=85 // loop_exit
                  _
              $region86: #{encoder_forward.1} parent=63 // pred_fallthru
                _
              // Predicated region
              $region101: #{encoder_forward.1} parent=63 // pred_check
                _
              $region102: #{encoder_forward.1} parent=63 // pred_check_branch
                %2179 = sbr.rel target = $region104
              $region103: #{encoder_forward.1} parent=63 // pred_region
                _
              $region104: #{encoder_forward.1} parent=63 // pred_fallthru
                _
            $region64: #{encoder_forward.1} parent=59 // pred_fallthru
              _
            // Predicated region
            $region65: #{encoder_forward.1} parent=59 // pred_check
              _
            $region66: #{encoder_forward.1} parent=59 // pred_check_branch
              %1936 = sbr.rel target = $region68
            $region67: #{encoder_forward.1} parent=59 // pred_region
              %s1938 = sdiv.u32.pop %s1925, 38
              %s1939 = srem.u32.pop %s1925, 38
              // While loop
              $region69: #{encoder_forward.1} parent=67 // loop_pre_header
                _
              $region70: #{encoder_forward.1} parent=67 // loop_header
                %s1941 = sphi 0, %s1943
                %p1942 = scmp.ge.s32.totalorder %s1941, %s1938
                %s1946 = sphi 0, %s2027
                %s1947 = sphi %s1918, %s2030
                %s1948 = sphi %s1929, %s2031
              $region71: #{encoder_forward.1} parent=67 // loop_header_branch
                %1945 = sbr.rel (%p1942) target = $region75
              $region72: #{encoder_forward.1} parent=67 // loop_body
                %v1949 = vld [vmem:[%s1947] sm:$0xff]
                %1950 = vst [vmem:[%s1948] sm:$0xff] %v1949
                %v1951 = vld [vmem:[%s1947 + $0x8] sm:$0xff]
                %1952 = vst [vmem:[%s1948 + $0x8] sm:$0xff] %v1951
                %v1953 = vld [vmem:[%s1947 + $0x10] sm:$0xff]
                %1954 = vst [vmem:[%s1948 + $0x10] sm:$0xff] %v1953
                %v1955 = vld [vmem:[%s1947 + $0x18] sm:$0xff]
                %1956 = vst [vmem:[%s1948 + $0x18] sm:$0xff] %v1955
                %v1957 = vld [vmem:[%s1947 + $0x20] sm:$0xff]
                %1958 = vst [vmem:[%s1948 + $0x20] sm:$0xff] %v1957
                %v1959 = vld [vmem:[%s1947 + $0x28] sm:$0xff]
                %1960 = vst [vmem:[%s1948 + $0x28] sm:$0xff] %v1959
                %v1961 = vld [vmem:[%s1947 + $0x30] sm:$0xff]
                %1962 = vst [vmem:[%s1948 + $0x30] sm:$0xff] %v1961
                %v1963 = vld [vmem:[%s1947 + $0x38] sm:$0xff]
                %1964 = vst [vmem:[%s1948 + $0x38] sm:$0xff] %v1963
                %v1965 = vld [vmem:[%s1947 + $0x40] sm:$0xff]
                %1966 = vst [vmem:[%s1948 + $0x40] sm:$0xff] %v1965
                %v1967 = vld [vmem:[%s1947 + $0x48] sm:$0xff]
                %1968 = vst [vmem:[%s1948 + $0x48] sm:$0xff] %v1967
                %v1969 = vld [vmem:[%s1947 + $0x50] sm:$0xff]
                %1970 = vst [vmem:[%s1948 + $0x50] sm:$0xff] %v1969
                %v1971 = vld [vmem:[%s1947 + $0x58] sm:$0xff]
                %1972 = vst [vmem:[%s1948 + $0x58] sm:$0xff] %v1971
                %v1973 = vld [vmem:[%s1947 + $0x60] sm:$0xff]
                %1974 = vst [vmem:[%s1948 + $0x60] sm:$0xff] %v1973
                %v1975 = vld [vmem:[%s1947 + $0x68] sm:$0xff]
                %1976 = vst [vmem:[%s1948 + $0x68] sm:$0xff] %v1975
                %v1977 = vld [vmem:[%s1947 + $0x70] sm:$0xff]
                %1978 = vst [vmem:[%s1948 + $0x70] sm:$0xff] %v1977
                %v1979 = vld [vmem:[%s1947 + $0x78] sm:$0xff]
                %1980 = vst [vmem:[%s1948 + $0x78] sm:$0xff] %v1979
                %v1981 = vld [vmem:[%s1947 + $0x80] sm:$0xff]
                %1982 = vst [vmem:[%s1948 + $0x80] sm:$0xff] %v1981
                %v1983 = vld [vmem:[%s1947 + $0x88] sm:$0xff]
                %1984 = vst [vmem:[%s1948 + $0x88] sm:$0xff] %v1983
                %v1985 = vld [vmem:[%s1947 + $0x90] sm:$0xff]
                %1986 = vst [vmem:[%s1948 + $0x90] sm:$0xff] %v1985
                %v1987 = vld [vmem:[%s1947 + $0x98] sm:$0xff]
                %1988 = vst [vmem:[%s1948 + $0x98] sm:$0xff] %v1987
                %v1989 = vld [vmem:[%s1947 + $0xa0] sm:$0xff]
                %1990 = vst [vmem:[%s1948 + $0xa0] sm:$0xff] %v1989
                %v1991 = vld [vmem:[%s1947 + $0xa8] sm:$0xff]
                %1992 = vst [vmem:[%s1948 + $0xa8] sm:$0xff] %v1991
                %v1993 = vld [vmem:[%s1947 + $0xb0] sm:$0xff]
                %1994 = vst [vmem:[%s1948 + $0xb0] sm:$0xff] %v1993
                %v1995 = vld [vmem:[%s1947 + $0xb8] sm:$0xff]
                %1996 = vst [vmem:[%s1948 + $0xb8] sm:$0xff] %v1995
                %v1997 = vld [vmem:[%s1947 + $0xc0] sm:$0xff]
                %1998 = vst [vmem:[%s1948 + $0xc0] sm:$0xff] %v1997
                %v1999 = vld [vmem:[%s1947 + $0xc8] sm:$0xff]
                %2000 = vst [vmem:[%s1948 + $0xc8] sm:$0xff] %v1999
                %v2001 = vld [vmem:[%s1947 + $0xd0] sm:$0xff]
                %2002 = vst [vmem:[%s1948 + $0xd0] sm:$0xff] %v2001
                %v2003 = vld [vmem:[%s1947 + $0xd8] sm:$0xff]
                %2004 = vst [vmem:[%s1948 + $0xd8] sm:$0xff] %v2003
                %v2005 = vld [vmem:[%s1947 + $0xe0] sm:$0xff]
                %2006 = vst [vmem:[%s1948 + $0xe0] sm:$0xff] %v2005
                %v2007 = vld [vmem:[%s1947 + $0xe8] sm:$0xff]
                %2008 = vst [vmem:[%s1948 + $0xe8] sm:$0xff] %v2007
                %v2009 = vld [vmem:[%s1947 + $0xf0] sm:$0xff]
                %2010 = vst [vmem:[%s1948 + $0xf0] sm:$0xff] %v2009
                %v2011 = vld [vmem:[%s1947 + $0xf8] sm:$0xff]
                %2012 = vst [vmem:[%s1948 + $0xf8] sm:$0xff] %v2011
                %v2013 = vld [vmem:[%s1947 + $0x100] sm:$0xff]
                %2014 = vst [vmem:[%s1948 + $0x100] sm:$0xff] %v2013
                %v2015 = vld [vmem:[%s1947 + $0x108] sm:$0xff]
                %2016 = vst [vmem:[%s1948 + $0x108] sm:$0xff] %v2015
                %v2017 = vld [vmem:[%s1947 + $0x110] sm:$0xff]
                %2018 = vst [vmem:[%s1948 + $0x110] sm:$0xff] %v2017
                %v2019 = vld [vmem:[%s1947 + $0x118] sm:$0xff]
                %2020 = vst [vmem:[%s1948 + $0x118] sm:$0xff] %v2019
                %v2021 = vld [vmem:[%s1947 + $0x120] sm:$0xff]
                %2022 = vst [vmem:[%s1948 + $0x120] sm:$0xff] %v2021
                %v2023 = vld [vmem:[%s1947 + $0x128] sm:$0xff]
                %2024 = vst [vmem:[%s1948 + $0x128] sm:$0xff] %v2023
                %s2025 = sadd.s32 1, %s1946
                %p2026 = scmp.ge.s32.totalorder %s2025, %s1938
                %s2027 = scalar_select %p2026, 0, %s2025
                %s2028 = smul.u32 %s2027, 304
                %s2029 = smul.u32 %s2027, 304
                %s2030 = scalar_lea.vmem %s1918, %s2028 [#allocation2]
                %s2031 = scalar_lea.vmem %s1929, %s2029
              $region73: #{encoder_forward.1} parent=67 // loop_footer
                %s1943 = sadd.s32 %s1941, 1
              $region74: #{encoder_forward.1} parent=67 // loop_footer_branch
                %1940 = sbr.rel target = $region70
              $region75: #{encoder_forward.1} parent=67 // loop_exit
                _
              %s2032 = sdiv.u32.pop %s1925, 38
              %s2033 = srem.u32.pop %s1925, 38
              %s2034 = smul.u32 %s2032, 38
              %s2035 = smul.u32 8, %s2034
              %s2036 = scalar_lea.vmem %s1918, %s2035 [#allocation2]
              %s2037 = smul.u32 8, %s2034
              %s2038 = scalar_lea.vmem %s1929, %s2037
              // While loop
              $region76: #{encoder_forward.1} parent=67 // loop_pre_header
                _
              $region77: #{encoder_forward.1} parent=67 // loop_header
                %s2040 = sphi 0, %s2042
                %p2041 = scmp.ge.s32.totalorder %s2040, %s2033
                %s2045 = sphi 0, %s2052
                %s2046 = sphi %s2036, %s2055
                %s2047 = sphi %s2038, %s2056
              $region78: #{encoder_forward.1} parent=67 // loop_header_branch
                %2044 = sbr.rel (%p2041) target = $region82
              $region79: #{encoder_forward.1} parent=67 // loop_body
                %v2048 = vld [vmem:[%s2046] sm:$0xff]
                %2049 = vst [vmem:[%s2047] sm:$0xff] %v2048
                %s2050 = sadd.s32 1, %s2045
                %p2051 = scmp.ge.s32.totalorder %s2050, %s2033
                %s2052 = scalar_select %p2051, 0, %s2050
                %s2053 = smul.u32 %s2052, 8
                %s2054 = smul.u32 %s2052, 8
                %s2055 = scalar_lea.vmem %s2036, %s2053 [#allocation2]
                %s2056 = scalar_lea.vmem %s2038, %s2054
              $region80: #{encoder_forward.1} parent=67 // loop_footer
                %s2042 = sadd.s32 %s2040, 1
              $region81: #{encoder_forward.1} parent=67 // loop_footer_branch
                %2039 = sbr.rel target = $region77
              $region82: #{encoder_forward.1} parent=67 // loop_exit
                _
            $region68: #{encoder_forward.1} parent=59 // pred_fallthru
              _
          $region60: #{encoder_forward.1} parent=55 // pred_fallthru
            _
          %2180 = vnop
        $region56: #{encoder_forward.1} parent=51 // pred_fallthru
          _
      $region52: #{encoder_forward.1} parent=5 // pred_fallthru
        _
      %p2181 = scmp.le.s32.totalorder 2, %s14
      // Predicated region
      $region105: #{encoder_forward.1} parent=5 // pred_check
        %p2182 = pneg %p2181
      $region106: #{encoder_forward.1} parent=5 // pred_check_branch
        %2184 = sbr.rel (%p2182) target = $region108
      $region107: #{encoder_forward.1} parent=5 // pred_region
        %s2185 = ssub.s32 %s14, 2
        // Predicated region
        $region109: #{encoder_forward.1} parent=107 // pred_check
          %p2186 = pneg %p221
        $region110: #{encoder_forward.1} parent=107 // pred_check_branch
          %2188 = sbr.rel (%p2186) target = $region112
        $region111: #{encoder_forward.1} parent=107 // pred_region
          %s2189 = sand.u32 %s206, 1
          %s2190 = sand.u32 %s206, 1
          %s2191 = smul.addr %s2190, 304
          %s2192 = scalar_lea.vmem [#allocation2], %s2191
        $region112: #{encoder_forward.1} parent=107 // pred_fallthru
          _
      $region108: #{encoder_forward.1} parent=5 // pred_fallthru
        _
    $region6: #{encoder_forward.1} parent=1 // loop_footer
      %s18 = sadd.s32 1, %s14
    $region7: #{encoder_forward.1} parent=1 // loop_footer_branch
      %13 = sbr.rel target = $region3
    $region8: #{encoder_forward.1} parent=1 // loop_exit
      _

</llo_original>
